<compile_context>
chip_gen: v7x
topology: tpu7x:2x2x1
jax: 0.10.0
libtpu: 0.0.40
codegen_flags: <defaults>
</compile_context>

<pallas_src>
import functools

import jax
import jax.numpy as jnp
import numpy as np
from jax.experimental import pallas as pl
from jax.experimental.pallas import tpu as pltpu


def channel_mask_kernel(q_ref, x_ref, o_ref):
    """One (batch, hw-tile) grid step: out = Q @ x.

    q_ref: (MaxC, Cin)   resident diagonal pad+scale matrix (same block all steps)
    x_ref: (Cin, T_hw)   one batch element's lane tile (batch dim squeezed)
    o_ref: (MaxC, T_hw)  lane-dense output tile, single full-block store
    """
    o_ref[...] = jnp.dot(
        q_ref[...], x_ref[...],
        preferred_element_type=jnp.float32,
        precision=jax.lax.Precision.HIGHEST,
    ).astype(o_ref.dtype)


def _pick_hw_tile(hw, cap=2048):
    """Largest lane tile <= cap that is a multiple of 128 and divides hw."""
    if hw <= cap:
        return hw
    start = (cap // 128) * 128
    for t in range(start, 0, -128):
        if hw % t == 0:
            return t
    return hw  # fallback: single tile along hw


def channel_mask_forward(x_nchw, alpha, masks, max_out_channels):
    """x: (N, Cin, H, W), alpha: (num_masks,), masks: (num_masks, MaxC)."""
    n, cin, h, w = x_nchw.shape
    hw = h * w
    out_dtype = x_nchw.dtype

    # ---- Hoisted, grid-step-invariant work (runs once in plain XLA) --------
    wts = jax.nn.softmax(alpha.astype(jnp.float32))                  # (M,)
    bm = jnp.clip(jnp.round(masks.astype(jnp.float32)), 0.0, 1.0)    # (M, MaxC)
    combined = jnp.sum(wts[:, None] * bm, axis=0)                    # (MaxC,)
    # Q[c, i] = combined[c] if c == i else 0 : folds channel pad + per-channel
    # scale into a single (MaxC, Cin) @ (Cin, T_hw) MXU pass per grid step.
    eye = jnp.eye(max_out_channels, cin, dtype=jnp.float32)          # (MaxC, Cin)
    q = combined[:, None] * eye                                      # (MaxC, Cin)

    x_flat = x_nchw.reshape(n, cin, hw)                              # free view

    # ---- Tiling --------------------------------------------------------------
    t_hw = _pick_hw_tile(hw)
    hw_tiles = hw // t_hw
    grid = (n, hw_tiles)

    cost = pl.CostEstimate(
        flops=2 * n * max_out_channels * cin * hw,
        transcendentals=0,
        bytes_accessed=(
            n * cin * hw * x_flat.dtype.itemsize
            + n * max_out_channels * hw * jnp.dtype(out_dtype).itemsize
            + max_out_channels * cin * 4
        ),
    )

    out = pl.pallas_call(
        channel_mask_kernel,
        out_shape=jax.ShapeDtypeStruct((n, max_out_channels, hw), out_dtype),
        grid_spec=pltpu.PrefetchScalarGridSpec(
            num_scalar_prefetch=0,
            grid=grid,
            in_specs=[
                # Q: tiny, resident in VMEM across all steps.
                pl.BlockSpec((max_out_channels, cin), lambda b, t: (0, 0)),
                # x tile: batch dim squeezed -> kernel sees (Cin, T_hw).
                pl.BlockSpec((pl.Squeezed(), cin, t_hw), lambda b, t: (b, 0, t)),
            ],
            out_specs=pl.BlockSpec((pl.Squeezed(), max_out_channels, t_hw),
                                   lambda b, t: (b, 0, t)),
        ),
        compiler_params=pltpu.CompilerParams(
            dimension_semantics=("parallel", "parallel")),
        cost_estimate=cost,
    )(q, x_flat)

    return out.reshape(n, max_out_channels, h, w)                    # free view


if __name__ == "__main__":
    # Module config (matches the PyTorch snippet's globals).
    in_channels = 3
    max_out_channels = 256
    num_masks = 3

    N, H, W = 2, 16, 16
    key = jax.random.PRNGKey(0)
    kx, ka, km = jax.random.split(key, 3)
    x = jax.random.normal(kx, (N, in_channels, H, W), dtype=jnp.float32)
    alpha = 0.5 * jax.random.normal(ka, (num_masks,), dtype=jnp.float32)
    masks = jax.random.uniform(km, (num_masks, max_out_channels), dtype=jnp.float32)

    out = channel_mask_forward(x, alpha, masks, max_out_channels)
    out = jax.block_until_ready(out)

    # Reference (plain XLA), mirroring the PyTorch forward exactly.
    wts = jax.nn.softmax(alpha)
    bm = jnp.clip(jnp.round(masks), 0.0, 1.0)
    combined = jnp.sum(wts[:, None] * bm, axis=0)                    # (MaxC,)
    x_pad = jnp.concatenate(
        [x, jnp.zeros((N, max_out_channels - in_channels, H, W), jnp.float32)],
        axis=1)
    ref = x_pad * combined[None, :, None, None]
    ref = jax.block_until_ready(ref)

    assert out.shape == (N, max_out_channels, H, W), out.shape
    assert out.dtype == x.dtype, out.dtype
    assert np.allclose(np.asarray(out), np.asarray(ref), atol=1e-4, rtol=1e-4)
    print("KERNEL_OK")
</pallas_src>

<mosaic_0001>
module attributes {stable_mosaic.version = 11 : i64} {
  func.func @channel_mask_kernel(%arg0: i32, %arg1: i32, %arg2: memref<256x3xf32, #tpu.memory_space<vmem>>, %arg3: memref<1x3x256xf32, #tpu.memory_space<vmem>>, %arg4: memref<1x256x256xf32, #tpu.memory_space<vmem>>) attributes {dimension_semantics = [#tpu.dimension_semantics<parallel>, #tpu.dimension_semantics<parallel>], iteration_bounds = array<i64: 2, 1>, scalar_prefetch = 0 : i64, scratch_operands = 0 : i64, tpu.core_type = #tpu.core_type<tc>, window_params = [{pipeline_mode = #tpu.pipeline_mode<synchronous>, transform_indices = @transform_0, window_bounds = array<i64: 256, 3>}, {transform_indices = @transform_1, window_bounds = array<i64: 1, 3, 256>}, {transform_indices = @transform_2, window_bounds = array<i64: 1, 256, 256>}]} {
    %c0 = arith.constant 0 : index
    %c0_0 = arith.constant 0 : index
    %0 = vector.load %arg2[%c0, %c0_0] : memref<256x3xf32, #tpu.memory_space<vmem>>, vector<256x3xf32>
    %c0_1 = arith.constant 0 : index
    %c0_2 = arith.constant 0 : index
    %c0_3 = arith.constant 0 : index
    %1 = vector.load %arg3[%c0_1, %c0_2, %c0_3] : memref<1x3x256xf32, #tpu.memory_space<vmem>>, vector<1x3x256xf32>
    %2 = vector.shape_cast %1 : vector<1x3x256xf32> to vector<3x256xf32>
    %cst = arith.constant dense<0.000000e+00> : vector<256x256xf32>
    %3 = tpu.matmul %0, %2, %cst {dimension_numbers = #tpu.dot_dimension_numbers<[1], [0], [0], [1], [0, 0, 1, 1], [], []>, precision = #tpu.contract_precision<fp32>} : vector<256x3xf32>, vector<3x256xf32>, vector<256x256xf32> -> vector<256x256xf32>
    %c0_4 = arith.constant 0 : index
    %c0_5 = arith.constant 0 : index
    %c0_6 = arith.constant 0 : index
    %4 = vector.load %arg4[%c0_4, %c0_5, %c0_6] : memref<1x256x256xf32, #tpu.memory_space<vmem>>, vector<1x256x256xf32>
    %5 = vector.shape_cast %4 : vector<1x256x256xf32> to vector<256x256xf32>
    %6 = vector.shape_cast %3 : vector<256x256xf32> to vector<1x256x256xf32>
    tpu.vector_store %arg4[%c0_4, %c0_5, %c0_6], %6 {strides = array<i32>} : memref<1x256x256xf32, #tpu.memory_space<vmem>>, vector<1x256x256xf32>,
    return
  }
  func.func @transform_0(%arg0: i32, %arg1: i32) -> (i32, i32) {
    %c0_i32 = arith.constant 0 : i32
    %c0_i32_0 = arith.constant 0 : i32
    %c0_i32_1 = arith.constant 0 : i32
    return %c0_i32, %c0_i32_0 : i32, i32
  }
  func.func @transform_1(%arg0: i32, %arg1: i32) -> (i32, i32, i32) {
    %c0_i32 = arith.constant 0 : i32
    %c0_i32_0 = arith.constant 0 : i32
    return %arg0, %c0_i32, %arg1 : i32, i32, i32
  }
  func.func @transform_2(%arg0: i32, %arg1: i32) -> (i32, i32, i32) {
    %c0_i32 = arith.constant 0 : i32
    %c0_i32_0 = arith.constant 0 : i32
    return %arg0, %c0_i32, %arg1 : i32, i32, i32
  }
}

</mosaic_0001>

<llo_original>
// kernel: tpu_custom_call.1
$region0: #{tpu_custom_call.1}
  #allocation0 [shape = 'u32[]', space=smem, size = 0x4, offset = 0x4, fixed_abs, tag = 'smem constant byte address 0x4 - core index']
  #allocation1 [shape = 'u32[144,128]{1,0:T(1,128)}', space=vmem, size = 0x12000, scoped, tag = 'internal scratch']
  %s0 = inlined_call_operand.vmem [shape: f32[256,3], index: 0, kind: input, shape index: {}]
  %s1 = inlined_call_operand.vmem [shape: f32[2,3,256], index: 1, kind: input, shape index: {}]
  %s2 = inlined_call_operand.hbm [shape: f32[2,256,256], index: 2, kind: output, shape index: {}]
  %s3 = sld [smem:[#allocation0]]
  $region41: #{tpu_custom_call.1} parent=0
    _
  %s5 = ssub.s32 1, %s3
  %s6 = scalar_select 0, %s5, %s3
  $region1: #{tpu_custom_call.1} parent=0
    #allocation2 [shape = 'u8[524288]{0}', space=vmem, size = 0x80000, scoped, tag = 'output window, operand 0']
    #allocation3 [shape = 's32[2]{0}', space=sflag, size = 0x8, scoped, tag = 'scoped memory for tpu_custom_call.1']
    %7 = vsyncpa [#allocation3], 0
    %s8 = scalar_lea.sflag [#allocation3], 1
    %9 = vsyncpa %s8, 0
    loop: start=0, step=1, limit=4
    $region2: #{tpu_custom_call.1} parent=1 // loop_pre_header
      _
    $region3: #{tpu_custom_call.1} parent=1 // loop_header
      %s11 = sphi 0, %s15
      %p12 = scmp.ge.s32.totalorder %s11, 4
      %s18 = sphi 0, %s30
      %s19 = sphi 0, %s26
      %s20 = sphi 0, %s18
      %s21 = sphi 0, %s19
      %s22 = sphi 0, %s20
      %s23 = sphi 0, %s21
      %s31 = sphi 0, %s31
      %s33 = sphi 0, %s31
      %s34 = sphi 0, %s33
      %s48 = sphi 0, %s34
      %s56 = sphi 0, %s58
      %s59 = sphi 0, %s56
      %s60 = sphi 0, %s59
      %s76 = sphi 0, %s60
      %s84 = sphi 0, %s86
      %s87 = sphi 0, %s84
      %s88 = sphi 0, %s87
      %s104 = sphi 0, %s88
    $region4: #{tpu_custom_call.1} parent=1 // loop_header_branch
      %14 = sbr.rel (%p12) target = $region8
    $region5: #{tpu_custom_call.1} parent=1 // loop_body
      %s16 = ssub.s32 %s11, 1
      %s17 = ssub.s32 %s11, 2
      %s24 = sadd.s32 1, %s19
      %p25 = scmp.ge.s32.totalorder %s24, 1
      %s26 = scalar_select %p25, 0, %s24
      %s27 = sadd.s32 1, %s18
      %s28 = scalar_select %p25, %s27, %s18
      %p29 = scmp.ge.s32.totalorder %s28, 2
      %s30 = scalar_select %p29, 0, %s28
      %s32 = sadd.s32 %s31, 1
      %p35 = scmp.eq.s32.totalorder %s11, 1
      %p36 = scmp.ne.s32.totalorder %s31, %s33
      %p37 = scmp.eq.s32.totalorder %s11, 0
      %p38 = por %p36, %p37
      %p39 = scmp.ne.s32.totalorder %s31, %s33
      %p40 = scmp.eq.s32.totalorder %s16, 1
      %p41 = por %p39, %p40
      %p42 = scmp.ne.s32.totalorder %s33, %s34
      %p43 = scmp.eq.s32.totalorder %s16, 0
      %p44 = por %p42, %p43
      %p45 = scmp.ne.s32.totalorder %s33, %s34
      %p46 = scmp.eq.s32.totalorder %s17, 1
      %p47 = por %p45, %p46
      %p49 = scmp.ne.s32.totalorder %s34, %s48
      %p50 = scmp.eq.s32.totalorder %s17, 0
      %p51 = por %p49, %p50
      %s52 = ssub.s32 %s18, %s30
      %s53 = ssub.s32 %s19, %s26
      %s54 = sor.u32 %s52, %s53
      %p55 = scmp.eq.s32.totalorder %s54, 0
      %s57 = sadd.s32 %s56, 1
      %s58 = scalar_select %p55, %s56, %s57
      %p61 = pneg %p55
      %p62 = scmp.eq.s32.totalorder %s11, 1
      %p63 = por %p61, %p62
      %p64 = scmp.ne.s32.totalorder %s56, %s59
      %p65 = scmp.eq.s32.totalorder %s11, 0
      %p66 = por %p64, %p65
      %p67 = scmp.ne.s32.totalorder %s56, %s59
      %p68 = scmp.eq.s32.totalorder %s16, 1
      %p69 = por %p67, %p68
      %p70 = scmp.ne.s32.totalorder %s59, %s60
      %p71 = scmp.eq.s32.totalorder %s16, 0
      %p72 = por %p70, %p71
      %p73 = scmp.ne.s32.totalorder %s59, %s60
      %p74 = scmp.eq.s32.totalorder %s17, 1
      %p75 = por %p73, %p74
      %p77 = scmp.ne.s32.totalorder %s60, %s76
      %p78 = scmp.eq.s32.totalorder %s17, 0
      %p79 = por %p77, %p78
      %s80 = ssub.s32 %s18, %s30
      %s81 = ssub.s32 %s19, %s26
      %s82 = sor.u32 %s80, %s81
      %p83 = scmp.eq.s32.totalorder %s82, 0
      %s85 = sadd.s32 %s84, 1
      %s86 = scalar_select %p83, %s84, %s85
      %p89 = pneg %p83
      %p90 = scmp.eq.s32.totalorder %s11, 1
      %p91 = por %p89, %p90
      %p92 = scmp.ne.s32.totalorder %s84, %s87
      %p93 = scmp.eq.s32.totalorder %s11, 0
      %p94 = por %p92, %p93
      %p95 = scmp.ne.s32.totalorder %s84, %s87
      %p96 = scmp.eq.s32.totalorder %s16, 1
      %p97 = por %p95, %p96
      %p98 = scmp.ne.s32.totalorder %s87, %s88
      %p99 = scmp.eq.s32.totalorder %s16, 0
      %p100 = por %p98, %p99
      %p101 = scmp.ne.s32.totalorder %s87, %s88
      %p102 = scmp.eq.s32.totalorder %s17, 1
      %p103 = por %p101, %p102
      %p105 = scmp.ne.s32.totalorder %s88, %s104
      %p106 = scmp.eq.s32.totalorder %s17, 0
      %p107 = por %p105, %p106
      %p108 = scmp.le.s32.totalorder 1, %s11
      %p109 = scmp.lt.s32.totalorder %s11, 3
      %p110 = pnand %p108, %p109
      %p111 = pneg %p110
      // Predicated region
      $region9: #{tpu_custom_call.1} parent=5 // pred_check
        _
      $region10: #{tpu_custom_call.1} parent=5 // pred_check_branch
        %113 = sbr.rel (%p110) target = $region12
      $region11: #{tpu_custom_call.1} parent=5 // pred_region
        %s114 = ssub.s32 %s11, 1
        // Predicated region
        $region13: #{tpu_custom_call.1} parent=11 // pred_check
          %p115 = pneg %p44
        $region14: #{tpu_custom_call.1} parent=11 // pred_check_branch
          %117 = sbr.rel (%p115) target = $region16
        $region15: #{tpu_custom_call.1} parent=11 // pred_region
          _
        $region16: #{tpu_custom_call.1} parent=11 // pred_fallthru
          _
      $region12: #{tpu_custom_call.1} parent=5 // pred_fallthru
        _
      %p118 = scmp.lt.s32.totalorder %s11, 2
      // Predicated region
      $region17: #{tpu_custom_call.1} parent=5 // pred_check
        %p119 = pneg %p118
      $region18: #{tpu_custom_call.1} parent=5 // pred_check_branch
        %121 = sbr.rel (%p119) target = $region20
      $region19: #{tpu_custom_call.1} parent=5 // pred_region
        // Predicated region
        $region21: #{tpu_custom_call.1} parent=19 // pred_check
          %p122 = pneg %p66
        $region22: #{tpu_custom_call.1} parent=19 // pred_check_branch
          %124 = sbr.rel (%p122) target = $region24
        $region23: #{tpu_custom_call.1} parent=19 // pred_region
          %s125 = smul.u32 2, %s19
          %p126 = scmp.lt.s32.totalorder %s18, 1
          %s127 = scalar_select %p126, %s18, 1
          %p128 = scmp.lt.s32.totalorder %s125, 1
          %s129 = scalar_select %p128, %s125, 1
          %s130 = smul.addr %s127, 2
          %s131 = sadd.s32 %s129, %s130
          %s132 = smul.addr %s131, 4
          %s133 = scalar_lea.vmem %s1, %s132
          %s134 = smul.u32 2, %s19
        $region24: #{tpu_custom_call.1} parent=19 // pred_fallthru
          _
      $region20: #{tpu_custom_call.1} parent=5 // pred_fallthru
        _
      %p135 = scmp.le.s32.totalorder 1, %s11
      %p136 = scmp.lt.s32.totalorder %s11, 3
      %p137 = pnand %p135, %p136
      %p138 = pneg %p137
      // Predicated region
      $region25: #{tpu_custom_call.1} parent=5 // pred_check
        _
      $region26: #{tpu_custom_call.1} parent=5 // pred_check_branch
        %140 = sbr.rel (%p137) target = $region28
      $region27: #{tpu_custom_call.1} parent=5 // pred_region
        %s141 = ssub.s32 %s11, 1
        %p142 = pneg %p44
        %p143 = pneg %p41
        %s144 = smul.u32 2, %s21
        %p145 = scmp.lt.s32.totalorder %s20, 1
        %s146 = scalar_select %p145, %s20, 1
        %p147 = scmp.lt.s32.totalorder %s144, 1
        %s148 = scalar_select %p147, %s144, 1
        %s149 = smul.addr %s146, 2
        %s150 = sadd.s32 %s148, %s149
        %s151 = smul.addr %s150, 4
        %s152 = scalar_lea.vmem %s1, %s151
        %p153 = pneg %p72
        %p154 = pneg %p69
        %p155 = pneg %p100
        %p156 = pneg %p97
        %s157 = sand.u32 %s87, 1
        %s158 = scalar_lea.sflag [#allocation3], %s157
        %s159 = sand.u32 %s87, 1
        %s160 = smul.addr %s159, 512
        %s161 = scalar_lea.vmem [#allocation2], %s160
        %s162 = smul.u32 2, %s21
        %p163 = scmp.lt.s32.totalorder %s20, 1
        %s164 = scalar_select %p163, %s20, 1
        %p165 = scmp.lt.s32.totalorder %s162, 1
        %s166 = scalar_select %p165, %s162, 1
        %s167 = smul.addr %s164, 2
        %s168 = sadd.s32 %s166, %s167
        %s169 = smul.addr %s168, 4
        %s170 = scalar_lea.vmem %s1, %s169
        %s171 = smul.u32 2, %s21
        %s172 = smul.u32 2, %s21
        %v173 = vld [vmem:[%s0] sm:$0xff]
        %v174 = vld [vmem:[%s0 + $0x8] sm:$0xff]
        %v175 = vld [vmem:[%s0 + $0x10] sm:$0xff]
        %v176 = vld [vmem:[%s0 + $0x18] sm:$0xff]
        %v177 = vld [vmem:[%s0 + $0x20] sm:$0xff]
        %v178 = vld [vmem:[%s0 + $0x28] sm:$0xff]
        %v179 = vld [vmem:[%s0 + $0x30] sm:$0xff]
        %v180 = vld [vmem:[%s0 + $0x38] sm:$0xff]
        %v181 = vld [vmem:[%s0 + $0x40] sm:$0xff]
        %v182 = vld [vmem:[%s0 + $0x48] sm:$0xff]
        %v183 = vld [vmem:[%s0 + $0x50] sm:$0xff]
        %v184 = vld [vmem:[%s0 + $0x58] sm:$0xff]
        %v185 = vld [vmem:[%s0 + $0x60] sm:$0xff]
        %v186 = vld [vmem:[%s0 + $0x68] sm:$0xff]
        %v187 = vld [vmem:[%s0 + $0x70] sm:$0xff]
        %v188 = vld [vmem:[%s0 + $0x78] sm:$0xff]
        %v189 = vld [vmem:[%s0 + $0x80] sm:$0xff]
        %v190 = vld [vmem:[%s0 + $0x88] sm:$0xff]
        %v191 = vld [vmem:[%s0 + $0x90] sm:$0xff]
        %v192 = vld [vmem:[%s0 + $0x98] sm:$0xff]
        %v193 = vld [vmem:[%s0 + $0xa0] sm:$0xff]
        %v194 = vld [vmem:[%s0 + $0xa8] sm:$0xff]
        %v195 = vld [vmem:[%s0 + $0xb0] sm:$0xff]
        %v196 = vld [vmem:[%s0 + $0xb8] sm:$0xff]
        %v197 = vld [vmem:[%s0 + $0xc0] sm:$0xff]
        %v198 = vld [vmem:[%s0 + $0xc8] sm:$0xff]
        %v199 = vld [vmem:[%s0 + $0xd0] sm:$0xff]
        %v200 = vld [vmem:[%s0 + $0xd8] sm:$0xff]
        %v201 = vld [vmem:[%s0 + $0xe0] sm:$0xff]
        %v202 = vld [vmem:[%s0 + $0xe8] sm:$0xff]
        %v203 = vld [vmem:[%s0 + $0xf0] sm:$0xff]
        %v204 = vld [vmem:[%s0 + $0xf8] sm:$0xff]
        %v205 = vld [vmem:[%s170] sm:$0x77]
        %v207 = vcombine.high %v205, %v205
        %vm208 = vcmask 23552
        %v210 = vsel %vm208, %v173, 0
        %v213 = vsel %vm208, %v174, 0
        %v216 = vsel %vm208, %v175, 0
        %v219 = vsel %vm208, %v176, 0
        %v222 = vsel %vm208, %v177, 0
        %v225 = vsel %vm208, %v178, 0
        %v228 = vsel %vm208, %v179, 0
        %v231 = vsel %vm208, %v180, 0
        %v234 = vsel %vm208, %v181, 0
        %v237 = vsel %vm208, %v182, 0
        %v240 = vsel %vm208, %v183, 0
        %v243 = vsel %vm208, %v184, 0
        %v246 = vsel %vm208, %v185, 0
        %v249 = vsel %vm208, %v186, 0
        %v252 = vsel %vm208, %v187, 0
        %v255 = vsel %vm208, %v188, 0
        %v258 = vsel %vm208, %v189, 0
        %v261 = vsel %vm208, %v190, 0
        %v264 = vsel %vm208, %v191, 0
        %v267 = vsel %vm208, %v192, 0
        %v270 = vsel %vm208, %v193, 0
        %v273 = vsel %vm208, %v194, 0
        %v276 = vsel %vm208, %v195, 0
        %v279 = vsel %vm208, %v196, 0
        %v282 = vsel %vm208, %v197, 0
        %v285 = vsel %vm208, %v198, 0
        %v288 = vsel %vm208, %v199, 0
        %v291 = vsel %vm208, %v200, 0
        %v294 = vsel %vm208, %v201, 0
        %v297 = vsel %vm208, %v202, 0
        %v300 = vsel %vm208, %v203, 0
        %v303 = vsel %vm208, %v204, 0
        %vm305 = vcmask 1042432
        %v306 = vsel %vm305, %v205, 0
        %v308 = vsel %vm305, %v207, 0
        %v310 = vand.u32 %v308, 4294901760
        %311 = vmatprep.subr.mxu0 %v310
        %v312 = vand.u32 %v306, 4294901760
        %313 = vmatpush1.msra.mxu0 %v312
        %314 = vmatprep.subr.mxu0 0.0
        %315 = vmatpush1.msra.mxu0 0.0
        %316 = vmatprep.subr.mxu0 0.0
        %317 = vmatpush1.msra.mxu0 0.0
        %318 = vmatprep.subr.mxu0 0.0
        %319 = vmatpush1.msra.mxu0 0.0
        %320 = vmatprep.subr.mxu0 0.0
        %321 = vmatpush1.msra.mxu0 0.0
        %322 = vmatprep.subr.mxu0 0.0
        %323 = vmatpush1.msra.mxu0 0.0
        %324 = vmatprep.subr.mxu0 0.0
        %325 = vmatpush1.msra.mxu0 0.0
        %326 = vmatprep.subr.mxu0 0.0
        %327 = vmatpush1.msra.mxu0 0.0
        %328 = vmatprep.subr.mxu0 0.0
        %329 = vmatpush1.msra.mxu0 0.0
        %330 = vmatprep.subr.mxu0 0.0
        %331 = vmatpush1.msra.mxu0 0.0
        %332 = vmatprep.subr.mxu0 0.0
        %333 = vmatpush1.msra.mxu0 0.0
        %334 = vmatprep.subr.mxu0 0.0
        %335 = vmatpush1.msra.mxu0 0.0
        %336 = vmatprep.subr.mxu0 0.0
        %337 = vmatpush1.msra.mxu0 0.0
        %338 = vmatprep.subr.mxu0 0.0
        %339 = vmatpush1.msra.mxu0 0.0
        %340 = vmatprep.subr.mxu0 0.0
        %341 = vmatpush1.msra.mxu0 0.0
        %342 = vmatprep.subr.mxu0 0.0
        %343 = vmatpush1.msra.mxu0 0.0
        %344 = vmatprep.subr.mxu0 0.0
        %345 = vmatpush1.msra.mxu0 0.0
        %346 = vmatprep.subr.mxu0 0.0
        %347 = vmatpush1.msra.mxu0 0.0
        %348 = vmatprep.subr.mxu0 0.0
        %349 = vmatpush1.msra.mxu0 0.0
        %350 = vmatprep.subr.mxu0 0.0
        %351 = vmatpush1.msra.mxu0 0.0
        %352 = vmatprep.subr.mxu0 0.0
        %353 = vmatpush1.msra.mxu0 0.0
        %354 = vmatprep.subr.mxu0 0.0
        %355 = vmatpush1.msra.mxu0 0.0
        %356 = vmatprep.subr.mxu0 0.0
        %357 = vmatpush1.msra.mxu0 0.0
        %358 = vmatprep.subr.mxu0 0.0
        %359 = vmatpush1.msra.mxu0 0.0
        %360 = vmatprep.subr.mxu0 0.0
        %361 = vmatpush1.msra.mxu0 0.0
        %362 = vmatprep.subr.mxu0 0.0
        %363 = vmatpush1.msra.mxu0 0.0
        %364 = vmatprep.subr.mxu0 0.0
        %365 = vmatpush1.msra.mxu0 0.0
        %366 = vmatprep.subr.mxu0 0.0
        %367 = vmatpush1.msra.mxu0 0.0
        %368 = vmatprep.subr.mxu0 0.0
        %369 = vmatpush1.msra.mxu0 0.0
        %370 = vmatprep.subr.mxu0 0.0
        %371 = vmatpush1.msra.mxu0 0.0
        %372 = vmatprep.subr.mxu0 0.0
        %373 = vmatpush1.msra.mxu0 0.0
        %374 = vmatprep.subr.mxu0 0.0
        %375 = vmatpush1.msra.mxu0 0.0
        %376 = vmatprep.mubr.f32.mxu0 0.0
        %v377 = vand.u32 %v210, 4294901760
        %v378 = vsub.f32 %v210, %v377
        %v379 = vand.u32 %v378, 4294901760
        %v380 = vsub.f32 %v378, %v379
        %v381 = vand.u32 %v380, 4294901760
        %382 = vmatmul.mubr.f32.gmra.mrb[0].mxu0 %v381
        %v383 = vpop.f32.mrb[0].mxu0
        %v384 = vadd.f32 0.0, %v383
        %v385 = vpop.f32.mrb[0].mxu0
        %v386 = vadd.f32 0.0, %v385
        %387 = vmatprep.mubr.f32.mxu0 0.0
        %v388 = vand.u32 %v213, 4294901760
        %v389 = vsub.f32 %v213, %v388
        %v390 = vand.u32 %v389, 4294901760
        %v391 = vsub.f32 %v389, %v390
        %v392 = vand.u32 %v391, 4294901760
        %393 = vmatmul.mubr.f32.gmra.mrb[0].mxu0 %v392
        %v394 = vpop.f32.mrb[0].mxu0
        %v395 = vadd.f32 0.0, %v394
        %v396 = vpop.f32.mrb[0].mxu0
        %v397 = vadd.f32 0.0, %v396
        %398 = vmatprep.mubr.f32.mxu0 0.0
        %v399 = vand.u32 %v216, 4294901760
        %v400 = vsub.f32 %v216, %v399
        %v401 = vand.u32 %v400, 4294901760
        %v402 = vsub.f32 %v400, %v401
        %v403 = vand.u32 %v402, 4294901760
        %404 = vmatmul.mubr.f32.gmra.mrb[0].mxu0 %v403
        %v405 = vpop.f32.mrb[0].mxu0
        %v406 = vadd.f32 0.0, %v405
        %v407 = vpop.f32.mrb[0].mxu0
        %v408 = vadd.f32 0.0, %v407
        %409 = vmatprep.mubr.f32.mxu0 0.0
        %v410 = vand.u32 %v219, 4294901760
        %v411 = vsub.f32 %v219, %v410
        %v412 = vand.u32 %v411, 4294901760
        %v413 = vsub.f32 %v411, %v412
        %v414 = vand.u32 %v413, 4294901760
        %415 = vmatmul.mubr.f32.gmra.mrb[0].mxu0 %v414
        %v416 = vpop.f32.mrb[0].mxu0
        %v417 = vadd.f32 0.0, %v416
        %v418 = vpop.f32.mrb[0].mxu0
        %v419 = vadd.f32 0.0, %v418
        %420 = vmatprep.mubr.f32.mxu0 0.0
        %v421 = vand.u32 %v222, 4294901760
        %v422 = vsub.f32 %v222, %v421
        %v423 = vand.u32 %v422, 4294901760
        %v424 = vsub.f32 %v422, %v423
        %v425 = vand.u32 %v424, 4294901760
        %426 = vmatmul.mubr.f32.gmra.mrb[0].mxu0 %v425
        %v427 = vpop.f32.mrb[0].mxu0
        %v428 = vadd.f32 0.0, %v427
        %v429 = vpop.f32.mrb[0].mxu0
        %v430 = vadd.f32 0.0, %v429
        %431 = vmatprep.mubr.f32.mxu0 0.0
        %v432 = vand.u32 %v225, 4294901760
        %v433 = vsub.f32 %v225, %v432
        %v434 = vand.u32 %v433, 4294901760
        %v435 = vsub.f32 %v433, %v434
        %v436 = vand.u32 %v435, 4294901760
        %437 = vmatmul.mubr.f32.gmra.mrb[0].mxu0 %v436
        %v438 = vpop.f32.mrb[0].mxu0
        %v439 = vadd.f32 0.0, %v438
        %v440 = vpop.f32.mrb[0].mxu0
        %v441 = vadd.f32 0.0, %v440
        %442 = vmatprep.mubr.f32.mxu0 0.0
        %v443 = vand.u32 %v228, 4294901760
        %v444 = vsub.f32 %v228, %v443
        %v445 = vand.u32 %v444, 4294901760
        %v446 = vsub.f32 %v444, %v445
        %v447 = vand.u32 %v446, 4294901760
        %448 = vmatmul.mubr.f32.gmra.mrb[0].mxu0 %v447
        %v449 = vpop.f32.mrb[0].mxu0
        %v450 = vadd.f32 0.0, %v449
        %v451 = vpop.f32.mrb[0].mxu0
        %v452 = vadd.f32 0.0, %v451
        %453 = vmatprep.mubr.f32.mxu0 0.0
        %v454 = vand.u32 %v231, 4294901760
        %v455 = vsub.f32 %v231, %v454
        %v456 = vand.u32 %v455, 4294901760
        %v457 = vsub.f32 %v455, %v456
        %v458 = vand.u32 %v457, 4294901760
        %459 = vmatmul.mubr.f32.gmra.mrb[0].mxu0 %v458
        %v460 = vpop.f32.mrb[0].mxu0
        %v461 = vadd.f32 0.0, %v460
        %v462 = vpop.f32.mrb[0].mxu0
        %v463 = vadd.f32 0.0, %v462
        %464 = vmatprep.mubr.f32.mxu0 0.0
        %v465 = vand.u32 %v234, 4294901760
        %v466 = vsub.f32 %v234, %v465
        %v467 = vand.u32 %v466, 4294901760
        %v468 = vsub.f32 %v466, %v467
        %v469 = vand.u32 %v468, 4294901760
        %470 = vmatmul.mubr.f32.gmra.mrb[0].mxu0 %v469
        %v471 = vpop.f32.mrb[0].mxu0
        %v472 = vadd.f32 0.0, %v471
        %v473 = vpop.f32.mrb[0].mxu0
        %v474 = vadd.f32 0.0, %v473
        %475 = vmatprep.mubr.f32.mxu0 0.0
        %v476 = vand.u32 %v237, 4294901760
        %v477 = vsub.f32 %v237, %v476
        %v478 = vand.u32 %v477, 4294901760
        %v479 = vsub.f32 %v477, %v478
        %v480 = vand.u32 %v479, 4294901760
        %481 = vmatmul.mubr.f32.gmra.mrb[0].mxu0 %v480
        %v482 = vpop.f32.mrb[0].mxu0
        %v483 = vadd.f32 0.0, %v482
        %v484 = vpop.f32.mrb[0].mxu0
        %v485 = vadd.f32 0.0, %v484
        %486 = vmatprep.mubr.f32.mxu0 0.0
        %v487 = vand.u32 %v240, 4294901760
        %v488 = vsub.f32 %v240, %v487
        %v489 = vand.u32 %v488, 4294901760
        %v490 = vsub.f32 %v488, %v489
        %v491 = vand.u32 %v490, 4294901760
        %492 = vmatmul.mubr.f32.gmra.mrb[0].mxu0 %v491
        %v493 = vpop.f32.mrb[0].mxu0
        %v494 = vadd.f32 0.0, %v493
        %v495 = vpop.f32.mrb[0].mxu0
        %v496 = vadd.f32 0.0, %v495
        %497 = vmatprep.mubr.f32.mxu0 0.0
        %v498 = vand.u32 %v243, 4294901760
        %v499 = vsub.f32 %v243, %v498
        %v500 = vand.u32 %v499, 4294901760
        %v501 = vsub.f32 %v499, %v500
        %v502 = vand.u32 %v501, 4294901760
        %503 = vmatmul.mubr.f32.gmra.mrb[0].mxu0 %v502
        %v504 = vpop.f32.mrb[0].mxu0
        %v505 = vadd.f32 0.0, %v504
        %v506 = vpop.f32.mrb[0].mxu0
        %v507 = vadd.f32 0.0, %v506
        %508 = vmatprep.mubr.f32.mxu0 0.0
        %v509 = vand.u32 %v246, 4294901760
        %v510 = vsub.f32 %v246, %v509
        %v511 = vand.u32 %v510, 4294901760
        %v512 = vsub.f32 %v510, %v511
        %v513 = vand.u32 %v512, 4294901760
        %514 = vmatmul.mubr.f32.gmra.mrb[0].mxu0 %v513
        %v515 = vpop.f32.mrb[0].mxu0
        %v516 = vadd.f32 0.0, %v515
        %v517 = vpop.f32.mrb[0].mxu0
        %v518 = vadd.f32 0.0, %v517
        %519 = vmatprep.mubr.f32.mxu0 0.0
        %v520 = vand.u32 %v249, 4294901760
        %v521 = vsub.f32 %v249, %v520
        %v522 = vand.u32 %v521, 4294901760
        %v523 = vsub.f32 %v521, %v522
        %v524 = vand.u32 %v523, 4294901760
        %525 = vmatmul.mubr.f32.gmra.mrb[0].mxu0 %v524
        %v526 = vpop.f32.mrb[0].mxu0
        %v527 = vadd.f32 0.0, %v526
        %v528 = vpop.f32.mrb[0].mxu0
        %v529 = vadd.f32 0.0, %v528
        %530 = vmatprep.mubr.f32.mxu0 0.0
        %v531 = vand.u32 %v252, 4294901760
        %v532 = vsub.f32 %v252, %v531
        %v533 = vand.u32 %v532, 4294901760
        %v534 = vsub.f32 %v532, %v533
        %v535 = vand.u32 %v534, 4294901760
        %536 = vmatmul.mubr.f32.gmra.mrb[0].mxu0 %v535
        %v537 = vpop.f32.mrb[0].mxu0
        %v538 = vadd.f32 0.0, %v537
        %v539 = vpop.f32.mrb[0].mxu0
        %v540 = vadd.f32 0.0, %v539
        %541 = vmatprep.mubr.f32.mxu0 0.0
        %v542 = vand.u32 %v255, 4294901760
        %v543 = vsub.f32 %v255, %v542
        %v544 = vand.u32 %v543, 4294901760
        %v545 = vsub.f32 %v543, %v544
        %v546 = vand.u32 %v545, 4294901760
        %547 = vmatmul.mubr.f32.gmra.mrb[0].mxu0 %v546
        %v548 = vpop.f32.mrb[0].mxu0
        %v549 = vadd.f32 0.0, %v548
        %v550 = vpop.f32.mrb[0].mxu0
        %v551 = vadd.f32 0.0, %v550
        %552 = vmatprep.mubr.f32.mxu0 0.0
        %v553 = vand.u32 %v258, 4294901760
        %v554 = vsub.f32 %v258, %v553
        %v555 = vand.u32 %v554, 4294901760
        %v556 = vsub.f32 %v554, %v555
        %v557 = vand.u32 %v556, 4294901760
        %558 = vmatmul.mubr.f32.gmra.mrb[0].mxu0 %v557
        %v559 = vpop.f32.mrb[0].mxu0
        %v560 = vadd.f32 0.0, %v559
        %v561 = vpop.f32.mrb[0].mxu0
        %v562 = vadd.f32 0.0, %v561
        %563 = vmatprep.mubr.f32.mxu0 0.0
        %v564 = vand.u32 %v261, 4294901760
        %v565 = vsub.f32 %v261, %v564
        %v566 = vand.u32 %v565, 4294901760
        %v567 = vsub.f32 %v565, %v566
        %v568 = vand.u32 %v567, 4294901760
        %569 = vmatmul.mubr.f32.gmra.mrb[0].mxu0 %v568
        %v570 = vpop.f32.mrb[0].mxu0
        %v571 = vadd.f32 0.0, %v570
        %v572 = vpop.f32.mrb[0].mxu0
        %v573 = vadd.f32 0.0, %v572
        %574 = vmatprep.mubr.f32.mxu0 0.0
        %v575 = vand.u32 %v264, 4294901760
        %v576 = vsub.f32 %v264, %v575
        %v577 = vand.u32 %v576, 4294901760
        %v578 = vsub.f32 %v576, %v577
        %v579 = vand.u32 %v578, 4294901760
        %580 = vmatmul.mubr.f32.gmra.mrb[0].mxu0 %v579
        %v581 = vpop.f32.mrb[0].mxu0
        %v582 = vadd.f32 0.0, %v581
        %v583 = vpop.f32.mrb[0].mxu0
        %v584 = vadd.f32 0.0, %v583
        %585 = vmatprep.mubr.f32.mxu0 0.0
        %v586 = vand.u32 %v267, 4294901760
        %v587 = vsub.f32 %v267, %v586
        %v588 = vand.u32 %v587, 4294901760
        %v589 = vsub.f32 %v587, %v588
        %v590 = vand.u32 %v589, 4294901760
        %591 = vmatmul.mubr.f32.gmra.mrb[0].mxu0 %v590
        %v592 = vpop.f32.mrb[0].mxu0
        %v593 = vadd.f32 0.0, %v592
        %v594 = vpop.f32.mrb[0].mxu0
        %v595 = vadd.f32 0.0, %v594
        %596 = vmatprep.mubr.f32.mxu0 0.0
        %v597 = vand.u32 %v270, 4294901760
        %v598 = vsub.f32 %v270, %v597
        %v599 = vand.u32 %v598, 4294901760
        %v600 = vsub.f32 %v598, %v599
        %v601 = vand.u32 %v600, 4294901760
        %602 = vmatmul.mubr.f32.gmra.mrb[0].mxu0 %v601
        %v603 = vpop.f32.mrb[0].mxu0
        %v604 = vadd.f32 0.0, %v603
        %v605 = vpop.f32.mrb[0].mxu0
        %v606 = vadd.f32 0.0, %v605
        %607 = vmatprep.mubr.f32.mxu0 0.0
        %v608 = vand.u32 %v273, 4294901760
        %v609 = vsub.f32 %v273, %v608
        %v610 = vand.u32 %v609, 4294901760
        %v611 = vsub.f32 %v609, %v610
        %v612 = vand.u32 %v611, 4294901760
        %613 = vmatmul.mubr.f32.gmra.mrb[0].mxu0 %v612
        %v614 = vpop.f32.mrb[0].mxu0
        %v615 = vadd.f32 0.0, %v614
        %v616 = vpop.f32.mrb[0].mxu0
        %v617 = vadd.f32 0.0, %v616
        %618 = vmatprep.mubr.f32.mxu0 0.0
        %v619 = vand.u32 %v276, 4294901760
        %v620 = vsub.f32 %v276, %v619
        %v621 = vand.u32 %v620, 4294901760
        %v622 = vsub.f32 %v620, %v621
        %v623 = vand.u32 %v622, 4294901760
        %624 = vmatmul.mubr.f32.gmra.mrb[0].mxu0 %v623
        %v625 = vpop.f32.mrb[0].mxu0
        %v626 = vadd.f32 0.0, %v625
        %v627 = vpop.f32.mrb[0].mxu0
        %v628 = vadd.f32 0.0, %v627
        %629 = vmatprep.mubr.f32.mxu0 0.0
        %v630 = vand.u32 %v279, 4294901760
        %v631 = vsub.f32 %v279, %v630
        %v632 = vand.u32 %v631, 4294901760
        %v633 = vsub.f32 %v631, %v632
        %v634 = vand.u32 %v633, 4294901760
        %635 = vmatmul.mubr.f32.gmra.mrb[0].mxu0 %v634
        %v636 = vpop.f32.mrb[0].mxu0
        %v637 = vadd.f32 0.0, %v636
        %v638 = vpop.f32.mrb[0].mxu0
        %v639 = vadd.f32 0.0, %v638
        %640 = vmatprep.mubr.f32.mxu0 0.0
        %v641 = vand.u32 %v282, 4294901760
        %v642 = vsub.f32 %v282, %v641
        %v643 = vand.u32 %v642, 4294901760
        %v644 = vsub.f32 %v642, %v643
        %v645 = vand.u32 %v644, 4294901760
        %646 = vmatmul.mubr.f32.gmra.mrb[0].mxu0 %v645
        %v647 = vpop.f32.mrb[0].mxu0
        %v648 = vadd.f32 0.0, %v647
        %v649 = vpop.f32.mrb[0].mxu0
        %v650 = vadd.f32 0.0, %v649
        %651 = vmatprep.mubr.f32.mxu0 0.0
        %v652 = vand.u32 %v285, 4294901760
        %v653 = vsub.f32 %v285, %v652
        %v654 = vand.u32 %v653, 4294901760
        %v655 = vsub.f32 %v653, %v654
        %v656 = vand.u32 %v655, 4294901760
        %657 = vmatmul.mubr.f32.gmra.mrb[0].mxu0 %v656
        %v658 = vpop.f32.mrb[0].mxu0
        %v659 = vadd.f32 0.0, %v658
        %v660 = vpop.f32.mrb[0].mxu0
        %v661 = vadd.f32 0.0, %v660
        %662 = vmatprep.mubr.f32.mxu0 0.0
        %v663 = vand.u32 %v288, 4294901760
        %v664 = vsub.f32 %v288, %v663
        %v665 = vand.u32 %v664, 4294901760
        %v666 = vsub.f32 %v664, %v665
        %v667 = vand.u32 %v666, 4294901760
        %668 = vmatmul.mubr.f32.gmra.mrb[0].mxu0 %v667
        %v669 = vpop.f32.mrb[0].mxu0
        %v670 = vadd.f32 0.0, %v669
        %v671 = vpop.f32.mrb[0].mxu0
        %v672 = vadd.f32 0.0, %v671
        %673 = vmatprep.mubr.f32.mxu0 0.0
        %v674 = vand.u32 %v291, 4294901760
        %v675 = vsub.f32 %v291, %v674
        %v676 = vand.u32 %v675, 4294901760
        %v677 = vsub.f32 %v675, %v676
        %v678 = vand.u32 %v677, 4294901760
        %679 = vmatmul.mubr.f32.gmra.mrb[0].mxu0 %v678
        %v680 = vpop.f32.mrb[0].mxu0
        %v681 = vadd.f32 0.0, %v680
        %v682 = vpop.f32.mrb[0].mxu0
        %v683 = vadd.f32 0.0, %v682
        %684 = vmatprep.mubr.f32.mxu0 0.0
        %v685 = vand.u32 %v294, 4294901760
        %v686 = vsub.f32 %v294, %v685
        %v687 = vand.u32 %v686, 4294901760
        %v688 = vsub.f32 %v686, %v687
        %v689 = vand.u32 %v688, 4294901760
        %690 = vmatmul.mubr.f32.gmra.mrb[0].mxu0 %v689
        %v691 = vpop.f32.mrb[0].mxu0
        %v692 = vadd.f32 0.0, %v691
        %v693 = vpop.f32.mrb[0].mxu0
        %v694 = vadd.f32 0.0, %v693
        %695 = vmatprep.mubr.f32.mxu0 0.0
        %v696 = vand.u32 %v297, 4294901760
        %v697 = vsub.f32 %v297, %v696
        %v698 = vand.u32 %v697, 4294901760
        %v699 = vsub.f32 %v697, %v698
        %v700 = vand.u32 %v699, 4294901760
        %701 = vmatmul.mubr.f32.gmra.mrb[0].mxu0 %v700
        %v702 = vpop.f32.mrb[0].mxu0
        %v703 = vadd.f32 0.0, %v702
        %v704 = vpop.f32.mrb[0].mxu0
        %v705 = vadd.f32 0.0, %v704
        %706 = vmatprep.mubr.f32.mxu0 0.0
        %v707 = vand.u32 %v300, 4294901760
        %v708 = vsub.f32 %v300, %v707
        %v709 = vand.u32 %v708, 4294901760
        %v710 = vsub.f32 %v708, %v709
        %v711 = vand.u32 %v710, 4294901760
        %712 = vmatmul.mubr.f32.gmra.mrb[0].mxu0 %v711
        %v713 = vpop.f32.mrb[0].mxu0
        %v714 = vadd.f32 0.0, %v713
        %v715 = vpop.f32.mrb[0].mxu0
        %v716 = vadd.f32 0.0, %v715
        %717 = vmatprep.mubr.f32.mxu0 0.0
        %v718 = vand.u32 %v303, 4294901760
        %v719 = vsub.f32 %v303, %v718
        %v720 = vand.u32 %v719, 4294901760
        %v721 = vsub.f32 %v719, %v720
        %v722 = vand.u32 %v721, 4294901760
        %723 = vmatmul.mubr.f32.gmra.mrb[0].mxu0 %v722
        %v724 = vpop.f32.mrb[0].mxu0
        %v725 = vadd.f32 0.0, %v724
        %v726 = vpop.f32.mrb[0].mxu0
        %v727 = vadd.f32 0.0, %v726
        %728 = vdwg.mxu0
        %v729 = vand.u32 %v308, 4294901760
        %v730 = vsub.f32 %v308, %v729
        %v731 = vand.u32 %v730, 4294901760
        %v732 = vsub.f32 %v730, %v731
        %v733 = vand.u32 %v732, 4294901760
        %734 = vmatprep.subr.mxu0 %v733
        %v735 = vand.u32 %v306, 4294901760
        %v736 = vsub.f32 %v306, %v735
        %v737 = vand.u32 %v736, 4294901760
        %v738 = vsub.f32 %v736, %v737
        %v739 = vand.u32 %v738, 4294901760
        %740 = vmatpush1.msra.mxu0 %v739
        %741 = vmatprep.subr.mxu0 0.0
        %742 = vmatpush1.msra.mxu0 0.0
        %743 = vmatprep.subr.mxu0 0.0
        %744 = vmatpush1.msra.mxu0 0.0
        %745 = vmatprep.subr.mxu0 0.0
        %746 = vmatpush1.msra.mxu0 0.0
        %747 = vmatprep.subr.mxu0 0.0
        %748 = vmatpush1.msra.mxu0 0.0
        %749 = vmatprep.subr.mxu0 0.0
        %750 = vmatpush1.msra.mxu0 0.0
        %751 = vmatprep.subr.mxu0 0.0
        %752 = vmatpush1.msra.mxu0 0.0
        %753 = vmatprep.subr.mxu0 0.0
        %754 = vmatpush1.msra.mxu0 0.0
        %755 = vmatprep.subr.mxu0 0.0
        %756 = vmatpush1.msra.mxu0 0.0
        %757 = vmatprep.subr.mxu0 0.0
        %758 = vmatpush1.msra.mxu0 0.0
        %759 = vmatprep.subr.mxu0 0.0
        %760 = vmatpush1.msra.mxu0 0.0
        %761 = vmatprep.subr.mxu0 0.0
        %762 = vmatpush1.msra.mxu0 0.0
        %763 = vmatprep.subr.mxu0 0.0
        %764 = vmatpush1.msra.mxu0 0.0
        %765 = vmatprep.subr.mxu0 0.0
        %766 = vmatpush1.msra.mxu0 0.0
        %767 = vmatprep.subr.mxu0 0.0
        %768 = vmatpush1.msra.mxu0 0.0
        %769 = vmatprep.subr.mxu0 0.0
        %770 = vmatpush1.msra.mxu0 0.0
        %771 = vmatprep.subr.mxu0 0.0
        %772 = vmatpush1.msra.mxu0 0.0
        %773 = vmatprep.subr.mxu0 0.0
        %774 = vmatpush1.msra.mxu0 0.0
        %775 = vmatprep.subr.mxu0 0.0
        %776 = vmatpush1.msra.mxu0 0.0
        %777 = vmatprep.subr.mxu0 0.0
        %778 = vmatpush1.msra.mxu0 0.0
        %779 = vmatprep.subr.mxu0 0.0
        %780 = vmatpush1.msra.mxu0 0.0
        %781 = vmatprep.subr.mxu0 0.0
        %782 = vmatpush1.msra.mxu0 0.0
        %783 = vmatprep.subr.mxu0 0.0
        %784 = vmatpush1.msra.mxu0 0.0
        %785 = vmatprep.subr.mxu0 0.0
        %786 = vmatpush1.msra.mxu0 0.0
        %787 = vmatprep.subr.mxu0 0.0
        %788 = vmatpush1.msra.mxu0 0.0
        %789 = vmatprep.subr.mxu0 0.0
        %790 = vmatpush1.msra.mxu0 0.0
        %791 = vmatprep.subr.mxu0 0.0
        %792 = vmatpush1.msra.mxu0 0.0
        %793 = vmatprep.subr.mxu0 0.0
        %794 = vmatpush1.msra.mxu0 0.0
        %795 = vmatprep.subr.mxu0 0.0
        %796 = vmatpush1.msra.mxu0 0.0
        %797 = vmatprep.subr.mxu0 0.0
        %798 = vmatpush1.msra.mxu0 0.0
        %799 = vmatprep.subr.mxu0 0.0
        %800 = vmatpush1.msra.mxu0 0.0
        %801 = vmatprep.subr.mxu0 0.0
        %802 = vmatpush1.msra.mxu0 0.0
        %803 = vmatprep.mubr.f32.mxu0 0.0
        %v804 = vand.u32 %v210, 4294901760
        %805 = vmatmul.mubr.f32.gmra.mrb[0].mxu0 %v804
        %v806 = vpop.f32.mrb[0].mxu0
        %v807 = vadd.f32 %v384, %v806
        %v808 = vpop.f32.mrb[0].mxu0
        %v809 = vadd.f32 %v386, %v808
        %810 = vmatprep.mubr.f32.mxu0 0.0
        %v811 = vand.u32 %v213, 4294901760
        %812 = vmatmul.mubr.f32.gmra.mrb[0].mxu0 %v811
        %v813 = vpop.f32.mrb[0].mxu0
        %v814 = vadd.f32 %v395, %v813
        %v815 = vpop.f32.mrb[0].mxu0
        %v816 = vadd.f32 %v397, %v815
        %817 = vmatprep.mubr.f32.mxu0 0.0
        %v818 = vand.u32 %v216, 4294901760
        %819 = vmatmul.mubr.f32.gmra.mrb[0].mxu0 %v818
        %v820 = vpop.f32.mrb[0].mxu0
        %v821 = vadd.f32 %v406, %v820
        %v822 = vpop.f32.mrb[0].mxu0
        %v823 = vadd.f32 %v408, %v822
        %824 = vmatprep.mubr.f32.mxu0 0.0
        %v825 = vand.u32 %v219, 4294901760
        %826 = vmatmul.mubr.f32.gmra.mrb[0].mxu0 %v825
        %v827 = vpop.f32.mrb[0].mxu0
        %v828 = vadd.f32 %v417, %v827
        %v829 = vpop.f32.mrb[0].mxu0
        %v830 = vadd.f32 %v419, %v829
        %831 = vmatprep.mubr.f32.mxu0 0.0
        %v832 = vand.u32 %v222, 4294901760
        %833 = vmatmul.mubr.f32.gmra.mrb[0].mxu0 %v832
        %v834 = vpop.f32.mrb[0].mxu0
        %v835 = vadd.f32 %v428, %v834
        %v836 = vpop.f32.mrb[0].mxu0
        %v837 = vadd.f32 %v430, %v836
        %838 = vmatprep.mubr.f32.mxu0 0.0
        %v839 = vand.u32 %v225, 4294901760
        %840 = vmatmul.mubr.f32.gmra.mrb[0].mxu0 %v839
        %v841 = vpop.f32.mrb[0].mxu0
        %v842 = vadd.f32 %v439, %v841
        %v843 = vpop.f32.mrb[0].mxu0
        %v844 = vadd.f32 %v441, %v843
        %845 = vmatprep.mubr.f32.mxu0 0.0
        %v846 = vand.u32 %v228, 4294901760
        %847 = vmatmul.mubr.f32.gmra.mrb[0].mxu0 %v846
        %v848 = vpop.f32.mrb[0].mxu0
        %v849 = vadd.f32 %v450, %v848
        %v850 = vpop.f32.mrb[0].mxu0
        %v851 = vadd.f32 %v452, %v850
        %852 = vmatprep.mubr.f32.mxu0 0.0
        %v853 = vand.u32 %v231, 4294901760
        %854 = vmatmul.mubr.f32.gmra.mrb[0].mxu0 %v853
        %v855 = vpop.f32.mrb[0].mxu0
        %v856 = vadd.f32 %v461, %v855
        %v857 = vpop.f32.mrb[0].mxu0
        %v858 = vadd.f32 %v463, %v857
        %859 = vmatprep.mubr.f32.mxu0 0.0
        %v860 = vand.u32 %v234, 4294901760
        %861 = vmatmul.mubr.f32.gmra.mrb[0].mxu0 %v860
        %v862 = vpop.f32.mrb[0].mxu0
        %v863 = vadd.f32 %v472, %v862
        %v864 = vpop.f32.mrb[0].mxu0
        %v865 = vadd.f32 %v474, %v864
        %866 = vmatprep.mubr.f32.mxu0 0.0
        %v867 = vand.u32 %v237, 4294901760
        %868 = vmatmul.mubr.f32.gmra.mrb[0].mxu0 %v867
        %v869 = vpop.f32.mrb[0].mxu0
        %v870 = vadd.f32 %v483, %v869
        %v871 = vpop.f32.mrb[0].mxu0
        %v872 = vadd.f32 %v485, %v871
        %873 = vmatprep.mubr.f32.mxu0 0.0
        %v874 = vand.u32 %v240, 4294901760
        %875 = vmatmul.mubr.f32.gmra.mrb[0].mxu0 %v874
        %v876 = vpop.f32.mrb[0].mxu0
        %v877 = vadd.f32 %v494, %v876
        %v878 = vpop.f32.mrb[0].mxu0
        %v879 = vadd.f32 %v496, %v878
        %880 = vmatprep.mubr.f32.mxu0 0.0
        %v881 = vand.u32 %v243, 4294901760
        %882 = vmatmul.mubr.f32.gmra.mrb[0].mxu0 %v881
        %v883 = vpop.f32.mrb[0].mxu0
        %v884 = vadd.f32 %v505, %v883
        %v885 = vpop.f32.mrb[0].mxu0
        %v886 = vadd.f32 %v507, %v885
        %887 = vmatprep.mubr.f32.mxu0 0.0
        %v888 = vand.u32 %v246, 4294901760
        %889 = vmatmul.mubr.f32.gmra.mrb[0].mxu0 %v888
        %v890 = vpop.f32.mrb[0].mxu0
        %v891 = vadd.f32 %v516, %v890
        %v892 = vpop.f32.mrb[0].mxu0
        %v893 = vadd.f32 %v518, %v892
        %894 = vmatprep.mubr.f32.mxu0 0.0
        %v895 = vand.u32 %v249, 4294901760
        %896 = vmatmul.mubr.f32.gmra.mrb[0].mxu0 %v895
        %v897 = vpop.f32.mrb[0].mxu0
        %v898 = vadd.f32 %v527, %v897
        %v899 = vpop.f32.mrb[0].mxu0
        %v900 = vadd.f32 %v529, %v899
        %901 = vmatprep.mubr.f32.mxu0 0.0
        %v902 = vand.u32 %v252, 4294901760
        %903 = vmatmul.mubr.f32.gmra.mrb[0].mxu0 %v902
        %v904 = vpop.f32.mrb[0].mxu0
        %v905 = vadd.f32 %v538, %v904
        %v906 = vpop.f32.mrb[0].mxu0
        %v907 = vadd.f32 %v540, %v906
        %908 = vmatprep.mubr.f32.mxu0 0.0
        %v909 = vand.u32 %v255, 4294901760
        %910 = vmatmul.mubr.f32.gmra.mrb[0].mxu0 %v909
        %v911 = vpop.f32.mrb[0].mxu0
        %v912 = vadd.f32 %v549, %v911
        %v913 = vpop.f32.mrb[0].mxu0
        %v914 = vadd.f32 %v551, %v913
        %915 = vmatprep.mubr.f32.mxu0 0.0
        %v916 = vand.u32 %v258, 4294901760
        %917 = vmatmul.mubr.f32.gmra.mrb[0].mxu0 %v916
        %v918 = vpop.f32.mrb[0].mxu0
        %v919 = vadd.f32 %v560, %v918
        %v920 = vpop.f32.mrb[0].mxu0
        %v921 = vadd.f32 %v562, %v920
        %922 = vmatprep.mubr.f32.mxu0 0.0
        %v923 = vand.u32 %v261, 4294901760
        %924 = vmatmul.mubr.f32.gmra.mrb[0].mxu0 %v923
        %v925 = vpop.f32.mrb[0].mxu0
        %v926 = vadd.f32 %v571, %v925
        %v927 = vpop.f32.mrb[0].mxu0
        %v928 = vadd.f32 %v573, %v927
        %929 = vmatprep.mubr.f32.mxu0 0.0
        %v930 = vand.u32 %v264, 4294901760
        %931 = vmatmul.mubr.f32.gmra.mrb[0].mxu0 %v930
        %v932 = vpop.f32.mrb[0].mxu0
        %v933 = vadd.f32 %v582, %v932
        %v934 = vpop.f32.mrb[0].mxu0
        %v935 = vadd.f32 %v584, %v934
        %936 = vmatprep.mubr.f32.mxu0 0.0
        %v937 = vand.u32 %v267, 4294901760
        %938 = vmatmul.mubr.f32.gmra.mrb[0].mxu0 %v937
        %v939 = vpop.f32.mrb[0].mxu0
        %v940 = vadd.f32 %v593, %v939
        %v941 = vpop.f32.mrb[0].mxu0
        %v942 = vadd.f32 %v595, %v941
        %943 = vmatprep.mubr.f32.mxu0 0.0
        %v944 = vand.u32 %v270, 4294901760
        %945 = vmatmul.mubr.f32.gmra.mrb[0].mxu0 %v944
        %v946 = vpop.f32.mrb[0].mxu0
        %v947 = vadd.f32 %v604, %v946
        %v948 = vpop.f32.mrb[0].mxu0
        %v949 = vadd.f32 %v606, %v948
        %950 = vmatprep.mubr.f32.mxu0 0.0
        %v951 = vand.u32 %v273, 4294901760
        %952 = vmatmul.mubr.f32.gmra.mrb[0].mxu0 %v951
        %v953 = vpop.f32.mrb[0].mxu0
        %v954 = vadd.f32 %v615, %v953
        %v955 = vpop.f32.mrb[0].mxu0
        %v956 = vadd.f32 %v617, %v955
        %957 = vmatprep.mubr.f32.mxu0 0.0
        %v958 = vand.u32 %v276, 4294901760
        %959 = vmatmul.mubr.f32.gmra.mrb[0].mxu0 %v958
        %v960 = vpop.f32.mrb[0].mxu0
        %v961 = vadd.f32 %v626, %v960
        %v962 = vpop.f32.mrb[0].mxu0
        %v963 = vadd.f32 %v628, %v962
        %964 = vmatprep.mubr.f32.mxu0 0.0
        %v965 = vand.u32 %v279, 4294901760
        %966 = vmatmul.mubr.f32.gmra.mrb[0].mxu0 %v965
        %v967 = vpop.f32.mrb[0].mxu0
        %v968 = vadd.f32 %v637, %v967
        %v969 = vpop.f32.mrb[0].mxu0
        %v970 = vadd.f32 %v639, %v969
        %971 = vmatprep.mubr.f32.mxu0 0.0
        %v972 = vand.u32 %v282, 4294901760
        %973 = vmatmul.mubr.f32.gmra.mrb[0].mxu0 %v972
        %v974 = vpop.f32.mrb[0].mxu0
        %v975 = vadd.f32 %v648, %v974
        %v976 = vpop.f32.mrb[0].mxu0
        %v977 = vadd.f32 %v650, %v976
        %978 = vmatprep.mubr.f32.mxu0 0.0
        %v979 = vand.u32 %v285, 4294901760
        %980 = vmatmul.mubr.f32.gmra.mrb[0].mxu0 %v979
        %v981 = vpop.f32.mrb[0].mxu0
        %v982 = vadd.f32 %v659, %v981
        %v983 = vpop.f32.mrb[0].mxu0
        %v984 = vadd.f32 %v661, %v983
        %985 = vmatprep.mubr.f32.mxu0 0.0
        %v986 = vand.u32 %v288, 4294901760
        %987 = vmatmul.mubr.f32.gmra.mrb[0].mxu0 %v986
        %v988 = vpop.f32.mrb[0].mxu0
        %v989 = vadd.f32 %v670, %v988
        %v990 = vpop.f32.mrb[0].mxu0
        %v991 = vadd.f32 %v672, %v990
        %992 = vmatprep.mubr.f32.mxu0 0.0
        %v993 = vand.u32 %v291, 4294901760
        %994 = vmatmul.mubr.f32.gmra.mrb[0].mxu0 %v993
        %v995 = vpop.f32.mrb[0].mxu0
        %v996 = vadd.f32 %v681, %v995
        %v997 = vpop.f32.mrb[0].mxu0
        %v998 = vadd.f32 %v683, %v997
        %999 = vmatprep.mubr.f32.mxu0 0.0
        %v1000 = vand.u32 %v294, 4294901760
        %1001 = vmatmul.mubr.f32.gmra.mrb[0].mxu0 %v1000
        %v1002 = vpop.f32.mrb[0].mxu0
        %v1003 = vadd.f32 %v692, %v1002
        %v1004 = vpop.f32.mrb[0].mxu0
        %v1005 = vadd.f32 %v694, %v1004
        %1006 = vmatprep.mubr.f32.mxu0 0.0
        %v1007 = vand.u32 %v297, 4294901760
        %1008 = vmatmul.mubr.f32.gmra.mrb[0].mxu0 %v1007
        %v1009 = vpop.f32.mrb[0].mxu0
        %v1010 = vadd.f32 %v703, %v1009
        %v1011 = vpop.f32.mrb[0].mxu0
        %v1012 = vadd.f32 %v705, %v1011
        %1013 = vmatprep.mubr.f32.mxu0 0.0
        %v1014 = vand.u32 %v300, 4294901760
        %1015 = vmatmul.mubr.f32.gmra.mrb[0].mxu0 %v1014
        %v1016 = vpop.f32.mrb[0].mxu0
        %v1017 = vadd.f32 %v714, %v1016
        %v1018 = vpop.f32.mrb[0].mxu0
        %v1019 = vadd.f32 %v716, %v1018
        %1020 = vmatprep.mubr.f32.mxu0 0.0
        %v1021 = vand.u32 %v303, 4294901760
        %1022 = vmatmul.mubr.f32.gmra.mrb[0].mxu0 %v1021
        %v1023 = vpop.f32.mrb[0].mxu0
        %v1024 = vadd.f32 %v725, %v1023
        %v1025 = vpop.f32.mrb[0].mxu0
        %v1026 = vadd.f32 %v727, %v1025
        %1027 = vdwg.mxu0
        %v1028 = vand.u32 %v308, 4294901760
        %v1029 = vsub.f32 %v308, %v1028
        %1030 = vmatprep.subr.mxu0 %v1029
        %v1031 = vand.u32 %v306, 4294901760
        %v1032 = vsub.f32 %v306, %v1031
        %1033 = vmatpush1.msra.mxu0 %v1032
        %1034 = vmatprep.subr.mxu0 0.0
        %1035 = vmatpush1.msra.mxu0 0.0
        %1036 = vmatprep.subr.mxu0 0.0
        %1037 = vmatpush1.msra.mxu0 0.0
        %1038 = vmatprep.subr.mxu0 0.0
        %1039 = vmatpush1.msra.mxu0 0.0
        %1040 = vmatprep.subr.mxu0 0.0
        %1041 = vmatpush1.msra.mxu0 0.0
        %1042 = vmatprep.subr.mxu0 0.0
        %1043 = vmatpush1.msra.mxu0 0.0
        %1044 = vmatprep.subr.mxu0 0.0
        %1045 = vmatpush1.msra.mxu0 0.0
        %1046 = vmatprep.subr.mxu0 0.0
        %1047 = vmatpush1.msra.mxu0 0.0
        %1048 = vmatprep.subr.mxu0 0.0
        %1049 = vmatpush1.msra.mxu0 0.0
        %1050 = vmatprep.subr.mxu0 0.0
        %1051 = vmatpush1.msra.mxu0 0.0
        %1052 = vmatprep.subr.mxu0 0.0
        %1053 = vmatpush1.msra.mxu0 0.0
        %1054 = vmatprep.subr.mxu0 0.0
        %1055 = vmatpush1.msra.mxu0 0.0
        %1056 = vmatprep.subr.mxu0 0.0
        %1057 = vmatpush1.msra.mxu0 0.0
        %1058 = vmatprep.subr.mxu0 0.0
        %1059 = vmatpush1.msra.mxu0 0.0
        %1060 = vmatprep.subr.mxu0 0.0
        %1061 = vmatpush1.msra.mxu0 0.0
        %1062 = vmatprep.subr.mxu0 0.0
        %1063 = vmatpush1.msra.mxu0 0.0
        %1064 = vmatprep.subr.mxu0 0.0
        %1065 = vmatpush1.msra.mxu0 0.0
        %1066 = vmatprep.subr.mxu0 0.0
        %1067 = vmatpush1.msra.mxu0 0.0
        %1068 = vmatprep.subr.mxu0 0.0
        %1069 = vmatpush1.msra.mxu0 0.0
        %1070 = vmatprep.subr.mxu0 0.0
        %1071 = vmatpush1.msra.mxu0 0.0
        %1072 = vmatprep.subr.mxu0 0.0
        %1073 = vmatpush1.msra.mxu0 0.0
        %1074 = vmatprep.subr.mxu0 0.0
        %1075 = vmatpush1.msra.mxu0 0.0
        %1076 = vmatprep.subr.mxu0 0.0
        %1077 = vmatpush1.msra.mxu0 0.0
        %1078 = vmatprep.subr.mxu0 0.0
        %1079 = vmatpush1.msra.mxu0 0.0
        %1080 = vmatprep.subr.mxu0 0.0
        %1081 = vmatpush1.msra.mxu0 0.0
        %1082 = vmatprep.subr.mxu0 0.0
        %1083 = vmatpush1.msra.mxu0 0.0
        %1084 = vmatprep.subr.mxu0 0.0
        %1085 = vmatpush1.msra.mxu0 0.0
        %1086 = vmatprep.subr.mxu0 0.0
        %1087 = vmatpush1.msra.mxu0 0.0
        %1088 = vmatprep.subr.mxu0 0.0
        %1089 = vmatpush1.msra.mxu0 0.0
        %1090 = vmatprep.subr.mxu0 0.0
        %1091 = vmatpush1.msra.mxu0 0.0
        %1092 = vmatprep.subr.mxu0 0.0
        %1093 = vmatpush1.msra.mxu0 0.0
        %1094 = vmatprep.subr.mxu0 0.0
        %1095 = vmatpush1.msra.mxu0 0.0
        %1096 = vmatprep.mubr.f32.mxu0 0.0
        %v1097 = vand.u32 %v210, 4294901760
        %v1098 = vsub.f32 %v210, %v1097
        %1099 = vmatmul.mubr.f32.gmra.mrb[0].mxu0 %v1098
        %v1100 = vpop.f32.mrb[0].mxu0
        %v1101 = vadd.f32 %v807, %v1100
        %v1102 = vpop.f32.mrb[0].mxu0
        %v1103 = vadd.f32 %v809, %v1102
        %1104 = vmatprep.mubr.f32.mxu0 0.0
        %v1105 = vand.u32 %v213, 4294901760
        %v1106 = vsub.f32 %v213, %v1105
        %1107 = vmatmul.mubr.f32.gmra.mrb[0].mxu0 %v1106
        %v1108 = vpop.f32.mrb[0].mxu0
        %v1109 = vadd.f32 %v814, %v1108
        %v1110 = vpop.f32.mrb[0].mxu0
        %v1111 = vadd.f32 %v816, %v1110
        %1112 = vmatprep.mubr.f32.mxu0 0.0
        %v1113 = vand.u32 %v216, 4294901760
        %v1114 = vsub.f32 %v216, %v1113
        %1115 = vmatmul.mubr.f32.gmra.mrb[0].mxu0 %v1114
        %v1116 = vpop.f32.mrb[0].mxu0
        %v1117 = vadd.f32 %v821, %v1116
        %v1118 = vpop.f32.mrb[0].mxu0
        %v1119 = vadd.f32 %v823, %v1118
        %1120 = vmatprep.mubr.f32.mxu0 0.0
        %v1121 = vand.u32 %v219, 4294901760
        %v1122 = vsub.f32 %v219, %v1121
        %1123 = vmatmul.mubr.f32.gmra.mrb[0].mxu0 %v1122
        %v1124 = vpop.f32.mrb[0].mxu0
        %v1125 = vadd.f32 %v828, %v1124
        %v1126 = vpop.f32.mrb[0].mxu0
        %v1127 = vadd.f32 %v830, %v1126
        %1128 = vmatprep.mubr.f32.mxu0 0.0
        %v1129 = vand.u32 %v222, 4294901760
        %v1130 = vsub.f32 %v222, %v1129
        %1131 = vmatmul.mubr.f32.gmra.mrb[0].mxu0 %v1130
        %v1132 = vpop.f32.mrb[0].mxu0
        %v1133 = vadd.f32 %v835, %v1132
        %v1134 = vpop.f32.mrb[0].mxu0
        %v1135 = vadd.f32 %v837, %v1134
        %1136 = vmatprep.mubr.f32.mxu0 0.0
        %v1137 = vand.u32 %v225, 4294901760
        %v1138 = vsub.f32 %v225, %v1137
        %1139 = vmatmul.mubr.f32.gmra.mrb[0].mxu0 %v1138
        %v1140 = vpop.f32.mrb[0].mxu0
        %v1141 = vadd.f32 %v842, %v1140
        %v1142 = vpop.f32.mrb[0].mxu0
        %v1143 = vadd.f32 %v844, %v1142
        %1144 = vmatprep.mubr.f32.mxu0 0.0
        %v1145 = vand.u32 %v228, 4294901760
        %v1146 = vsub.f32 %v228, %v1145
        %1147 = vmatmul.mubr.f32.gmra.mrb[0].mxu0 %v1146
        %v1148 = vpop.f32.mrb[0].mxu0
        %v1149 = vadd.f32 %v849, %v1148
        %v1150 = vpop.f32.mrb[0].mxu0
        %v1151 = vadd.f32 %v851, %v1150
        %1152 = vmatprep.mubr.f32.mxu0 0.0
        %v1153 = vand.u32 %v231, 4294901760
        %v1154 = vsub.f32 %v231, %v1153
        %1155 = vmatmul.mubr.f32.gmra.mrb[0].mxu0 %v1154
        %v1156 = vpop.f32.mrb[0].mxu0
        %v1157 = vadd.f32 %v856, %v1156
        %v1158 = vpop.f32.mrb[0].mxu0
        %v1159 = vadd.f32 %v858, %v1158
        %1160 = vmatprep.mubr.f32.mxu0 0.0
        %v1161 = vand.u32 %v234, 4294901760
        %v1162 = vsub.f32 %v234, %v1161
        %1163 = vmatmul.mubr.f32.gmra.mrb[0].mxu0 %v1162
        %v1164 = vpop.f32.mrb[0].mxu0
        %v1165 = vadd.f32 %v863, %v1164
        %v1166 = vpop.f32.mrb[0].mxu0
        %v1167 = vadd.f32 %v865, %v1166
        %1168 = vmatprep.mubr.f32.mxu0 0.0
        %v1169 = vand.u32 %v237, 4294901760
        %v1170 = vsub.f32 %v237, %v1169
        %1171 = vmatmul.mubr.f32.gmra.mrb[0].mxu0 %v1170
        %v1172 = vpop.f32.mrb[0].mxu0
        %v1173 = vadd.f32 %v870, %v1172
        %v1174 = vpop.f32.mrb[0].mxu0
        %v1175 = vadd.f32 %v872, %v1174
        %1176 = vmatprep.mubr.f32.mxu0 0.0
        %v1177 = vand.u32 %v240, 4294901760
        %v1178 = vsub.f32 %v240, %v1177
        %1179 = vmatmul.mubr.f32.gmra.mrb[0].mxu0 %v1178
        %v1180 = vpop.f32.mrb[0].mxu0
        %v1181 = vadd.f32 %v877, %v1180
        %v1182 = vpop.f32.mrb[0].mxu0
        %v1183 = vadd.f32 %v879, %v1182
        %1184 = vmatprep.mubr.f32.mxu0 0.0
        %v1185 = vand.u32 %v243, 4294901760
        %v1186 = vsub.f32 %v243, %v1185
        %1187 = vmatmul.mubr.f32.gmra.mrb[0].mxu0 %v1186
        %v1188 = vpop.f32.mrb[0].mxu0
        %v1189 = vadd.f32 %v884, %v1188
        %v1190 = vpop.f32.mrb[0].mxu0
        %v1191 = vadd.f32 %v886, %v1190
        %1192 = vmatprep.mubr.f32.mxu0 0.0
        %v1193 = vand.u32 %v246, 4294901760
        %v1194 = vsub.f32 %v246, %v1193
        %1195 = vmatmul.mubr.f32.gmra.mrb[0].mxu0 %v1194
        %v1196 = vpop.f32.mrb[0].mxu0
        %v1197 = vadd.f32 %v891, %v1196
        %v1198 = vpop.f32.mrb[0].mxu0
        %v1199 = vadd.f32 %v893, %v1198
        %1200 = vmatprep.mubr.f32.mxu0 0.0
        %v1201 = vand.u32 %v249, 4294901760
        %v1202 = vsub.f32 %v249, %v1201
        %1203 = vmatmul.mubr.f32.gmra.mrb[0].mxu0 %v1202
        %v1204 = vpop.f32.mrb[0].mxu0
        %v1205 = vadd.f32 %v898, %v1204
        %v1206 = vpop.f32.mrb[0].mxu0
        %v1207 = vadd.f32 %v900, %v1206
        %1208 = vmatprep.mubr.f32.mxu0 0.0
        %v1209 = vand.u32 %v252, 4294901760
        %v1210 = vsub.f32 %v252, %v1209
        %1211 = vmatmul.mubr.f32.gmra.mrb[0].mxu0 %v1210
        %v1212 = vpop.f32.mrb[0].mxu0
        %v1213 = vadd.f32 %v905, %v1212
        %v1214 = vpop.f32.mrb[0].mxu0
        %v1215 = vadd.f32 %v907, %v1214
        %1216 = vmatprep.mubr.f32.mxu0 0.0
        %v1217 = vand.u32 %v255, 4294901760
        %v1218 = vsub.f32 %v255, %v1217
        %1219 = vmatmul.mubr.f32.gmra.mrb[0].mxu0 %v1218
        %v1220 = vpop.f32.mrb[0].mxu0
        %v1221 = vadd.f32 %v912, %v1220
        %v1222 = vpop.f32.mrb[0].mxu0
        %v1223 = vadd.f32 %v914, %v1222
        %1224 = vmatprep.mubr.f32.mxu0 0.0
        %v1225 = vand.u32 %v258, 4294901760
        %v1226 = vsub.f32 %v258, %v1225
        %1227 = vmatmul.mubr.f32.gmra.mrb[0].mxu0 %v1226
        %v1228 = vpop.f32.mrb[0].mxu0
        %v1229 = vadd.f32 %v919, %v1228
        %v1230 = vpop.f32.mrb[0].mxu0
        %v1231 = vadd.f32 %v921, %v1230
        %1232 = vmatprep.mubr.f32.mxu0 0.0
        %v1233 = vand.u32 %v261, 4294901760
        %v1234 = vsub.f32 %v261, %v1233
        %1235 = vmatmul.mubr.f32.gmra.mrb[0].mxu0 %v1234
        %v1236 = vpop.f32.mrb[0].mxu0
        %v1237 = vadd.f32 %v926, %v1236
        %v1238 = vpop.f32.mrb[0].mxu0
        %v1239 = vadd.f32 %v928, %v1238
        %1240 = vmatprep.mubr.f32.mxu0 0.0
        %v1241 = vand.u32 %v264, 4294901760
        %v1242 = vsub.f32 %v264, %v1241
        %1243 = vmatmul.mubr.f32.gmra.mrb[0].mxu0 %v1242
        %v1244 = vpop.f32.mrb[0].mxu0
        %v1245 = vadd.f32 %v933, %v1244
        %v1246 = vpop.f32.mrb[0].mxu0
        %v1247 = vadd.f32 %v935, %v1246
        %1248 = vmatprep.mubr.f32.mxu0 0.0
        %v1249 = vand.u32 %v267, 4294901760
        %v1250 = vsub.f32 %v267, %v1249
        %1251 = vmatmul.mubr.f32.gmra.mrb[0].mxu0 %v1250
        %v1252 = vpop.f32.mrb[0].mxu0
        %v1253 = vadd.f32 %v940, %v1252
        %v1254 = vpop.f32.mrb[0].mxu0
        %v1255 = vadd.f32 %v942, %v1254
        %1256 = vmatprep.mubr.f32.mxu0 0.0
        %v1257 = vand.u32 %v270, 4294901760
        %v1258 = vsub.f32 %v270, %v1257
        %1259 = vmatmul.mubr.f32.gmra.mrb[0].mxu0 %v1258
        %v1260 = vpop.f32.mrb[0].mxu0
        %v1261 = vadd.f32 %v947, %v1260
        %v1262 = vpop.f32.mrb[0].mxu0
        %v1263 = vadd.f32 %v949, %v1262
        %1264 = vmatprep.mubr.f32.mxu0 0.0
        %v1265 = vand.u32 %v273, 4294901760
        %v1266 = vsub.f32 %v273, %v1265
        %1267 = vmatmul.mubr.f32.gmra.mrb[0].mxu0 %v1266
        %v1268 = vpop.f32.mrb[0].mxu0
        %v1269 = vadd.f32 %v954, %v1268
        %v1270 = vpop.f32.mrb[0].mxu0
        %v1271 = vadd.f32 %v956, %v1270
        %1272 = vmatprep.mubr.f32.mxu0 0.0
        %v1273 = vand.u32 %v276, 4294901760
        %v1274 = vsub.f32 %v276, %v1273
        %1275 = vmatmul.mubr.f32.gmra.mrb[0].mxu0 %v1274
        %v1276 = vpop.f32.mrb[0].mxu0
        %v1277 = vadd.f32 %v961, %v1276
        %v1278 = vpop.f32.mrb[0].mxu0
        %v1279 = vadd.f32 %v963, %v1278
        %1280 = vmatprep.mubr.f32.mxu0 0.0
        %v1281 = vand.u32 %v279, 4294901760
        %v1282 = vsub.f32 %v279, %v1281
        %1283 = vmatmul.mubr.f32.gmra.mrb[0].mxu0 %v1282
        %v1284 = vpop.f32.mrb[0].mxu0
        %v1285 = vadd.f32 %v968, %v1284
        %v1286 = vpop.f32.mrb[0].mxu0
        %v1287 = vadd.f32 %v970, %v1286
        %1288 = vmatprep.mubr.f32.mxu0 0.0
        %v1289 = vand.u32 %v282, 4294901760
        %v1290 = vsub.f32 %v282, %v1289
        %1291 = vmatmul.mubr.f32.gmra.mrb[0].mxu0 %v1290
        %v1292 = vpop.f32.mrb[0].mxu0
        %v1293 = vadd.f32 %v975, %v1292
        %v1294 = vpop.f32.mrb[0].mxu0
        %v1295 = vadd.f32 %v977, %v1294
        %1296 = vmatprep.mubr.f32.mxu0 0.0
        %v1297 = vand.u32 %v285, 4294901760
        %v1298 = vsub.f32 %v285, %v1297
        %1299 = vmatmul.mubr.f32.gmra.mrb[0].mxu0 %v1298
        %v1300 = vpop.f32.mrb[0].mxu0
        %v1301 = vadd.f32 %v982, %v1300
        %v1302 = vpop.f32.mrb[0].mxu0
        %v1303 = vadd.f32 %v984, %v1302
        %1304 = vmatprep.mubr.f32.mxu0 0.0
        %v1305 = vand.u32 %v288, 4294901760
        %v1306 = vsub.f32 %v288, %v1305
        %1307 = vmatmul.mubr.f32.gmra.mrb[0].mxu0 %v1306
        %v1308 = vpop.f32.mrb[0].mxu0
        %v1309 = vadd.f32 %v989, %v1308
        %v1310 = vpop.f32.mrb[0].mxu0
        %v1311 = vadd.f32 %v991, %v1310
        %1312 = vmatprep.mubr.f32.mxu0 0.0
        %v1313 = vand.u32 %v291, 4294901760
        %v1314 = vsub.f32 %v291, %v1313
        %1315 = vmatmul.mubr.f32.gmra.mrb[0].mxu0 %v1314
        %v1316 = vpop.f32.mrb[0].mxu0
        %v1317 = vadd.f32 %v996, %v1316
        %v1318 = vpop.f32.mrb[0].mxu0
        %v1319 = vadd.f32 %v998, %v1318
        %1320 = vmatprep.mubr.f32.mxu0 0.0
        %v1321 = vand.u32 %v294, 4294901760
        %v1322 = vsub.f32 %v294, %v1321
        %1323 = vmatmul.mubr.f32.gmra.mrb[0].mxu0 %v1322
        %v1324 = vpop.f32.mrb[0].mxu0
        %v1325 = vadd.f32 %v1003, %v1324
        %v1326 = vpop.f32.mrb[0].mxu0
        %v1327 = vadd.f32 %v1005, %v1326
        %1328 = vmatprep.mubr.f32.mxu0 0.0
        %v1329 = vand.u32 %v297, 4294901760
        %v1330 = vsub.f32 %v297, %v1329
        %1331 = vmatmul.mubr.f32.gmra.mrb[0].mxu0 %v1330
        %v1332 = vpop.f32.mrb[0].mxu0
        %v1333 = vadd.f32 %v1010, %v1332
        %v1334 = vpop.f32.mrb[0].mxu0
        %v1335 = vadd.f32 %v1012, %v1334
        %1336 = vmatprep.mubr.f32.mxu0 0.0
        %v1337 = vand.u32 %v300, 4294901760
        %v1338 = vsub.f32 %v300, %v1337
        %1339 = vmatmul.mubr.f32.gmra.mrb[0].mxu0 %v1338
        %v1340 = vpop.f32.mrb[0].mxu0
        %v1341 = vadd.f32 %v1017, %v1340
        %v1342 = vpop.f32.mrb[0].mxu0
        %v1343 = vadd.f32 %v1019, %v1342
        %1344 = vmatprep.mubr.f32.mxu0 0.0
        %v1345 = vand.u32 %v303, 4294901760
        %v1346 = vsub.f32 %v303, %v1345
        %1347 = vmatmul.mubr.f32.gmra.mrb[0].mxu0 %v1346
        %v1348 = vpop.f32.mrb[0].mxu0
        %v1349 = vadd.f32 %v1024, %v1348
        %v1350 = vpop.f32.mrb[0].mxu0
        %v1351 = vadd.f32 %v1026, %v1350
        %1352 = vdwg.mxu0
        %v1353 = vand.u32 %v308, 4294901760
        %1354 = vmatprep.subr.mxu0 %v1353
        %v1355 = vand.u32 %v306, 4294901760
        %1356 = vmatpush1.msra.mxu0 %v1355
        %1357 = vmatprep.subr.mxu0 0.0
        %1358 = vmatpush1.msra.mxu0 0.0
        %1359 = vmatprep.subr.mxu0 0.0
        %1360 = vmatpush1.msra.mxu0 0.0
        %1361 = vmatprep.subr.mxu0 0.0
        %1362 = vmatpush1.msra.mxu0 0.0
        %1363 = vmatprep.subr.mxu0 0.0
        %1364 = vmatpush1.msra.mxu0 0.0
        %1365 = vmatprep.subr.mxu0 0.0
        %1366 = vmatpush1.msra.mxu0 0.0
        %1367 = vmatprep.subr.mxu0 0.0
        %1368 = vmatpush1.msra.mxu0 0.0
        %1369 = vmatprep.subr.mxu0 0.0
        %1370 = vmatpush1.msra.mxu0 0.0
        %1371 = vmatprep.subr.mxu0 0.0
        %1372 = vmatpush1.msra.mxu0 0.0
        %1373 = vmatprep.subr.mxu0 0.0
        %1374 = vmatpush1.msra.mxu0 0.0
        %1375 = vmatprep.subr.mxu0 0.0
        %1376 = vmatpush1.msra.mxu0 0.0
        %1377 = vmatprep.subr.mxu0 0.0
        %1378 = vmatpush1.msra.mxu0 0.0
        %1379 = vmatprep.subr.mxu0 0.0
        %1380 = vmatpush1.msra.mxu0 0.0
        %1381 = vmatprep.subr.mxu0 0.0
        %1382 = vmatpush1.msra.mxu0 0.0
        %1383 = vmatprep.subr.mxu0 0.0
        %1384 = vmatpush1.msra.mxu0 0.0
        %1385 = vmatprep.subr.mxu0 0.0
        %1386 = vmatpush1.msra.mxu0 0.0
        %1387 = vmatprep.subr.mxu0 0.0
        %1388 = vmatpush1.msra.mxu0 0.0
        %1389 = vmatprep.subr.mxu0 0.0
        %1390 = vmatpush1.msra.mxu0 0.0
        %1391 = vmatprep.subr.mxu0 0.0
        %1392 = vmatpush1.msra.mxu0 0.0
        %1393 = vmatprep.subr.mxu0 0.0
        %1394 = vmatpush1.msra.mxu0 0.0
        %1395 = vmatprep.subr.mxu0 0.0
        %1396 = vmatpush1.msra.mxu0 0.0
        %1397 = vmatprep.subr.mxu0 0.0
        %1398 = vmatpush1.msra.mxu0 0.0
        %1399 = vmatprep.subr.mxu0 0.0
        %1400 = vmatpush1.msra.mxu0 0.0
        %1401 = vmatprep.subr.mxu0 0.0
        %1402 = vmatpush1.msra.mxu0 0.0
        %1403 = vmatprep.subr.mxu0 0.0
        %1404 = vmatpush1.msra.mxu0 0.0
        %1405 = vmatprep.subr.mxu0 0.0
        %1406 = vmatpush1.msra.mxu0 0.0
        %1407 = vmatprep.subr.mxu0 0.0
        %1408 = vmatpush1.msra.mxu0 0.0
        %1409 = vmatprep.subr.mxu0 0.0
        %1410 = vmatpush1.msra.mxu0 0.0
        %1411 = vmatprep.subr.mxu0 0.0
        %1412 = vmatpush1.msra.mxu0 0.0
        %1413 = vmatprep.subr.mxu0 0.0
        %1414 = vmatpush1.msra.mxu0 0.0
        %1415 = vmatprep.subr.mxu0 0.0
        %1416 = vmatpush1.msra.mxu0 0.0
        %1417 = vmatprep.subr.mxu0 0.0
        %1418 = vmatpush1.msra.mxu0 0.0
        %1419 = vmatprep.mubr.f32.mxu0 0.0
        %v1420 = vand.u32 %v210, 4294901760
        %v1421 = vsub.f32 %v210, %v1420
        %v1422 = vand.u32 %v1421, 4294901760
        %1423 = vmatmul.mubr.f32.gmra.mrb[0].mxu0 %v1422
        %v1424 = vpop.f32.mrb[0].mxu0
        %v1425 = vadd.f32 %v1101, %v1424
        %v1426 = vpop.f32.mrb[0].mxu0
        %v1427 = vadd.f32 %v1103, %v1426
        %1428 = vmatprep.mubr.f32.mxu0 0.0
        %v1429 = vand.u32 %v213, 4294901760
        %v1430 = vsub.f32 %v213, %v1429
        %v1431 = vand.u32 %v1430, 4294901760
        %1432 = vmatmul.mubr.f32.gmra.mrb[0].mxu0 %v1431
        %v1433 = vpop.f32.mrb[0].mxu0
        %v1434 = vadd.f32 %v1109, %v1433
        %v1435 = vpop.f32.mrb[0].mxu0
        %v1436 = vadd.f32 %v1111, %v1435
        %1437 = vmatprep.mubr.f32.mxu0 0.0
        %v1438 = vand.u32 %v216, 4294901760
        %v1439 = vsub.f32 %v216, %v1438
        %v1440 = vand.u32 %v1439, 4294901760
        %1441 = vmatmul.mubr.f32.gmra.mrb[0].mxu0 %v1440
        %v1442 = vpop.f32.mrb[0].mxu0
        %v1443 = vadd.f32 %v1117, %v1442
        %v1444 = vpop.f32.mrb[0].mxu0
        %v1445 = vadd.f32 %v1119, %v1444
        %1446 = vmatprep.mubr.f32.mxu0 0.0
        %v1447 = vand.u32 %v219, 4294901760
        %v1448 = vsub.f32 %v219, %v1447
        %v1449 = vand.u32 %v1448, 4294901760
        %1450 = vmatmul.mubr.f32.gmra.mrb[0].mxu0 %v1449
        %v1451 = vpop.f32.mrb[0].mxu0
        %v1452 = vadd.f32 %v1125, %v1451
        %v1453 = vpop.f32.mrb[0].mxu0
        %v1454 = vadd.f32 %v1127, %v1453
        %1455 = vmatprep.mubr.f32.mxu0 0.0
        %v1456 = vand.u32 %v222, 4294901760
        %v1457 = vsub.f32 %v222, %v1456
        %v1458 = vand.u32 %v1457, 4294901760
        %1459 = vmatmul.mubr.f32.gmra.mrb[0].mxu0 %v1458
        %v1460 = vpop.f32.mrb[0].mxu0
        %v1461 = vadd.f32 %v1133, %v1460
        %v1462 = vpop.f32.mrb[0].mxu0
        %v1463 = vadd.f32 %v1135, %v1462
        %1464 = vmatprep.mubr.f32.mxu0 0.0
        %v1465 = vand.u32 %v225, 4294901760
        %v1466 = vsub.f32 %v225, %v1465
        %v1467 = vand.u32 %v1466, 4294901760
        %1468 = vmatmul.mubr.f32.gmra.mrb[0].mxu0 %v1467
        %v1469 = vpop.f32.mrb[0].mxu0
        %v1470 = vadd.f32 %v1141, %v1469
        %v1471 = vpop.f32.mrb[0].mxu0
        %v1472 = vadd.f32 %v1143, %v1471
        %1473 = vmatprep.mubr.f32.mxu0 0.0
        %v1474 = vand.u32 %v228, 4294901760
        %v1475 = vsub.f32 %v228, %v1474
        %v1476 = vand.u32 %v1475, 4294901760
        %1477 = vmatmul.mubr.f32.gmra.mrb[0].mxu0 %v1476
        %v1478 = vpop.f32.mrb[0].mxu0
        %v1479 = vadd.f32 %v1149, %v1478
        %v1480 = vpop.f32.mrb[0].mxu0
        %v1481 = vadd.f32 %v1151, %v1480
        %1482 = vmatprep.mubr.f32.mxu0 0.0
        %v1483 = vand.u32 %v231, 4294901760
        %v1484 = vsub.f32 %v231, %v1483
        %v1485 = vand.u32 %v1484, 4294901760
        %1486 = vmatmul.mubr.f32.gmra.mrb[0].mxu0 %v1485
        %v1487 = vpop.f32.mrb[0].mxu0
        %v1488 = vadd.f32 %v1157, %v1487
        %v1489 = vpop.f32.mrb[0].mxu0
        %v1490 = vadd.f32 %v1159, %v1489
        %1491 = vmatprep.mubr.f32.mxu0 0.0
        %v1492 = vand.u32 %v234, 4294901760
        %v1493 = vsub.f32 %v234, %v1492
        %v1494 = vand.u32 %v1493, 4294901760
        %1495 = vmatmul.mubr.f32.gmra.mrb[0].mxu0 %v1494
        %v1496 = vpop.f32.mrb[0].mxu0
        %v1497 = vadd.f32 %v1165, %v1496
        %v1498 = vpop.f32.mrb[0].mxu0
        %v1499 = vadd.f32 %v1167, %v1498
        %1500 = vmatprep.mubr.f32.mxu0 0.0
        %v1501 = vand.u32 %v237, 4294901760
        %v1502 = vsub.f32 %v237, %v1501
        %v1503 = vand.u32 %v1502, 4294901760
        %1504 = vmatmul.mubr.f32.gmra.mrb[0].mxu0 %v1503
        %v1505 = vpop.f32.mrb[0].mxu0
        %v1506 = vadd.f32 %v1173, %v1505
        %v1507 = vpop.f32.mrb[0].mxu0
        %v1508 = vadd.f32 %v1175, %v1507
        %1509 = vmatprep.mubr.f32.mxu0 0.0
        %v1510 = vand.u32 %v240, 4294901760
        %v1511 = vsub.f32 %v240, %v1510
        %v1512 = vand.u32 %v1511, 4294901760
        %1513 = vmatmul.mubr.f32.gmra.mrb[0].mxu0 %v1512
        %v1514 = vpop.f32.mrb[0].mxu0
        %v1515 = vadd.f32 %v1181, %v1514
        %v1516 = vpop.f32.mrb[0].mxu0
        %v1517 = vadd.f32 %v1183, %v1516
        %1518 = vmatprep.mubr.f32.mxu0 0.0
        %v1519 = vand.u32 %v243, 4294901760
        %v1520 = vsub.f32 %v243, %v1519
        %v1521 = vand.u32 %v1520, 4294901760
        %1522 = vmatmul.mubr.f32.gmra.mrb[0].mxu0 %v1521
        %v1523 = vpop.f32.mrb[0].mxu0
        %v1524 = vadd.f32 %v1189, %v1523
        %v1525 = vpop.f32.mrb[0].mxu0
        %v1526 = vadd.f32 %v1191, %v1525
        %1527 = vmatprep.mubr.f32.mxu0 0.0
        %v1528 = vand.u32 %v246, 4294901760
        %v1529 = vsub.f32 %v246, %v1528
        %v1530 = vand.u32 %v1529, 4294901760
        %1531 = vmatmul.mubr.f32.gmra.mrb[0].mxu0 %v1530
        %v1532 = vpop.f32.mrb[0].mxu0
        %v1533 = vadd.f32 %v1197, %v1532
        %v1534 = vpop.f32.mrb[0].mxu0
        %v1535 = vadd.f32 %v1199, %v1534
        %1536 = vmatprep.mubr.f32.mxu0 0.0
        %v1537 = vand.u32 %v249, 4294901760
        %v1538 = vsub.f32 %v249, %v1537
        %v1539 = vand.u32 %v1538, 4294901760
        %1540 = vmatmul.mubr.f32.gmra.mrb[0].mxu0 %v1539
        %v1541 = vpop.f32.mrb[0].mxu0
        %v1542 = vadd.f32 %v1205, %v1541
        %v1543 = vpop.f32.mrb[0].mxu0
        %v1544 = vadd.f32 %v1207, %v1543
        %1545 = vmatprep.mubr.f32.mxu0 0.0
        %v1546 = vand.u32 %v252, 4294901760
        %v1547 = vsub.f32 %v252, %v1546
        %v1548 = vand.u32 %v1547, 4294901760
        %1549 = vmatmul.mubr.f32.gmra.mrb[0].mxu0 %v1548
        %v1550 = vpop.f32.mrb[0].mxu0
        %v1551 = vadd.f32 %v1213, %v1550
        %v1552 = vpop.f32.mrb[0].mxu0
        %v1553 = vadd.f32 %v1215, %v1552
        %1554 = vmatprep.mubr.f32.mxu0 0.0
        %v1555 = vand.u32 %v255, 4294901760
        %v1556 = vsub.f32 %v255, %v1555
        %v1557 = vand.u32 %v1556, 4294901760
        %1558 = vmatmul.mubr.f32.gmra.mrb[0].mxu0 %v1557
        %v1559 = vpop.f32.mrb[0].mxu0
        %v1560 = vadd.f32 %v1221, %v1559
        %v1561 = vpop.f32.mrb[0].mxu0
        %v1562 = vadd.f32 %v1223, %v1561
        %1563 = vmatprep.mubr.f32.mxu0 0.0
        %v1564 = vand.u32 %v258, 4294901760
        %v1565 = vsub.f32 %v258, %v1564
        %v1566 = vand.u32 %v1565, 4294901760
        %1567 = vmatmul.mubr.f32.gmra.mrb[0].mxu0 %v1566
        %v1568 = vpop.f32.mrb[0].mxu0
        %v1569 = vadd.f32 %v1229, %v1568
        %v1570 = vpop.f32.mrb[0].mxu0
        %v1571 = vadd.f32 %v1231, %v1570
        %1572 = vmatprep.mubr.f32.mxu0 0.0
        %v1573 = vand.u32 %v261, 4294901760
        %v1574 = vsub.f32 %v261, %v1573
        %v1575 = vand.u32 %v1574, 4294901760
        %1576 = vmatmul.mubr.f32.gmra.mrb[0].mxu0 %v1575
        %v1577 = vpop.f32.mrb[0].mxu0
        %v1578 = vadd.f32 %v1237, %v1577
        %v1579 = vpop.f32.mrb[0].mxu0
        %v1580 = vadd.f32 %v1239, %v1579
        %1581 = vmatprep.mubr.f32.mxu0 0.0
        %v1582 = vand.u32 %v264, 4294901760
        %v1583 = vsub.f32 %v264, %v1582
        %v1584 = vand.u32 %v1583, 4294901760
        %1585 = vmatmul.mubr.f32.gmra.mrb[0].mxu0 %v1584
        %v1586 = vpop.f32.mrb[0].mxu0
        %v1587 = vadd.f32 %v1245, %v1586
        %v1588 = vpop.f32.mrb[0].mxu0
        %v1589 = vadd.f32 %v1247, %v1588
        %1590 = vmatprep.mubr.f32.mxu0 0.0
        %v1591 = vand.u32 %v267, 4294901760
        %v1592 = vsub.f32 %v267, %v1591
        %v1593 = vand.u32 %v1592, 4294901760
        %1594 = vmatmul.mubr.f32.gmra.mrb[0].mxu0 %v1593
        %v1595 = vpop.f32.mrb[0].mxu0
        %v1596 = vadd.f32 %v1253, %v1595
        %v1597 = vpop.f32.mrb[0].mxu0
        %v1598 = vadd.f32 %v1255, %v1597
        %1599 = vmatprep.mubr.f32.mxu0 0.0
        %v1600 = vand.u32 %v270, 4294901760
        %v1601 = vsub.f32 %v270, %v1600
        %v1602 = vand.u32 %v1601, 4294901760
        %1603 = vmatmul.mubr.f32.gmra.mrb[0].mxu0 %v1602
        %v1604 = vpop.f32.mrb[0].mxu0
        %v1605 = vadd.f32 %v1261, %v1604
        %v1606 = vpop.f32.mrb[0].mxu0
        %v1607 = vadd.f32 %v1263, %v1606
        %1608 = vmatprep.mubr.f32.mxu0 0.0
        %v1609 = vand.u32 %v273, 4294901760
        %v1610 = vsub.f32 %v273, %v1609
        %v1611 = vand.u32 %v1610, 4294901760
        %1612 = vmatmul.mubr.f32.gmra.mrb[0].mxu0 %v1611
        %v1613 = vpop.f32.mrb[0].mxu0
        %v1614 = vadd.f32 %v1269, %v1613
        %v1615 = vpop.f32.mrb[0].mxu0
        %v1616 = vadd.f32 %v1271, %v1615
        %1617 = vmatprep.mubr.f32.mxu0 0.0
        %v1618 = vand.u32 %v276, 4294901760
        %v1619 = vsub.f32 %v276, %v1618
        %v1620 = vand.u32 %v1619, 4294901760
        %1621 = vmatmul.mubr.f32.gmra.mrb[0].mxu0 %v1620
        %v1622 = vpop.f32.mrb[0].mxu0
        %v1623 = vadd.f32 %v1277, %v1622
        %v1624 = vpop.f32.mrb[0].mxu0
        %v1625 = vadd.f32 %v1279, %v1624
        %1626 = vmatprep.mubr.f32.mxu0 0.0
        %v1627 = vand.u32 %v279, 4294901760
        %v1628 = vsub.f32 %v279, %v1627
        %v1629 = vand.u32 %v1628, 4294901760
        %1630 = vmatmul.mubr.f32.gmra.mrb[0].mxu0 %v1629
        %v1631 = vpop.f32.mrb[0].mxu0
        %v1632 = vadd.f32 %v1285, %v1631
        %v1633 = vpop.f32.mrb[0].mxu0
        %v1634 = vadd.f32 %v1287, %v1633
        %1635 = vmatprep.mubr.f32.mxu0 0.0
        %v1636 = vand.u32 %v282, 4294901760
        %v1637 = vsub.f32 %v282, %v1636
        %v1638 = vand.u32 %v1637, 4294901760
        %1639 = vmatmul.mubr.f32.gmra.mrb[0].mxu0 %v1638
        %v1640 = vpop.f32.mrb[0].mxu0
        %v1641 = vadd.f32 %v1293, %v1640
        %v1642 = vpop.f32.mrb[0].mxu0
        %v1643 = vadd.f32 %v1295, %v1642
        %1644 = vmatprep.mubr.f32.mxu0 0.0
        %v1645 = vand.u32 %v285, 4294901760
        %v1646 = vsub.f32 %v285, %v1645
        %v1647 = vand.u32 %v1646, 4294901760
        %1648 = vmatmul.mubr.f32.gmra.mrb[0].mxu0 %v1647
        %v1649 = vpop.f32.mrb[0].mxu0
        %v1650 = vadd.f32 %v1301, %v1649
        %v1651 = vpop.f32.mrb[0].mxu0
        %v1652 = vadd.f32 %v1303, %v1651
        %1653 = vmatprep.mubr.f32.mxu0 0.0
        %v1654 = vand.u32 %v288, 4294901760
        %v1655 = vsub.f32 %v288, %v1654
        %v1656 = vand.u32 %v1655, 4294901760
        %1657 = vmatmul.mubr.f32.gmra.mrb[0].mxu0 %v1656
        %v1658 = vpop.f32.mrb[0].mxu0
        %v1659 = vadd.f32 %v1309, %v1658
        %v1660 = vpop.f32.mrb[0].mxu0
        %v1661 = vadd.f32 %v1311, %v1660
        %1662 = vmatprep.mubr.f32.mxu0 0.0
        %v1663 = vand.u32 %v291, 4294901760
        %v1664 = vsub.f32 %v291, %v1663
        %v1665 = vand.u32 %v1664, 4294901760
        %1666 = vmatmul.mubr.f32.gmra.mrb[0].mxu0 %v1665
        %v1667 = vpop.f32.mrb[0].mxu0
        %v1668 = vadd.f32 %v1317, %v1667
        %v1669 = vpop.f32.mrb[0].mxu0
        %v1670 = vadd.f32 %v1319, %v1669
        %1671 = vmatprep.mubr.f32.mxu0 0.0
        %v1672 = vand.u32 %v294, 4294901760
        %v1673 = vsub.f32 %v294, %v1672
        %v1674 = vand.u32 %v1673, 4294901760
        %1675 = vmatmul.mubr.f32.gmra.mrb[0].mxu0 %v1674
        %v1676 = vpop.f32.mrb[0].mxu0
        %v1677 = vadd.f32 %v1325, %v1676
        %v1678 = vpop.f32.mrb[0].mxu0
        %v1679 = vadd.f32 %v1327, %v1678
        %1680 = vmatprep.mubr.f32.mxu0 0.0
        %v1681 = vand.u32 %v297, 4294901760
        %v1682 = vsub.f32 %v297, %v1681
        %v1683 = vand.u32 %v1682, 4294901760
        %1684 = vmatmul.mubr.f32.gmra.mrb[0].mxu0 %v1683
        %v1685 = vpop.f32.mrb[0].mxu0
        %v1686 = vadd.f32 %v1333, %v1685
        %v1687 = vpop.f32.mrb[0].mxu0
        %v1688 = vadd.f32 %v1335, %v1687
        %1689 = vmatprep.mubr.f32.mxu0 0.0
        %v1690 = vand.u32 %v300, 4294901760
        %v1691 = vsub.f32 %v300, %v1690
        %v1692 = vand.u32 %v1691, 4294901760
        %1693 = vmatmul.mubr.f32.gmra.mrb[0].mxu0 %v1692
        %v1694 = vpop.f32.mrb[0].mxu0
        %v1695 = vadd.f32 %v1341, %v1694
        %v1696 = vpop.f32.mrb[0].mxu0
        %v1697 = vadd.f32 %v1343, %v1696
        %1698 = vmatprep.mubr.f32.mxu0 0.0
        %v1699 = vand.u32 %v303, 4294901760
        %v1700 = vsub.f32 %v303, %v1699
        %v1701 = vand.u32 %v1700, 4294901760
        %1702 = vmatmul.mubr.f32.gmra.mrb[0].mxu0 %v1701
        %v1703 = vpop.f32.mrb[0].mxu0
        %v1704 = vadd.f32 %v1349, %v1703
        %v1705 = vpop.f32.mrb[0].mxu0
        %v1706 = vadd.f32 %v1351, %v1705
        %1707 = vdwg.mxu0
        %v1708 = vand.u32 %v308, 4294901760
        %v1709 = vsub.f32 %v308, %v1708
        %v1710 = vand.u32 %v1709, 4294901760
        %1711 = vmatprep.subr.mxu0 %v1710
        %v1712 = vand.u32 %v306, 4294901760
        %v1713 = vsub.f32 %v306, %v1712
        %v1714 = vand.u32 %v1713, 4294901760
        %1715 = vmatpush1.msra.mxu0 %v1714
        %1716 = vmatprep.subr.mxu0 0.0
        %1717 = vmatpush1.msra.mxu0 0.0
        %1718 = vmatprep.subr.mxu0 0.0
        %1719 = vmatpush1.msra.mxu0 0.0
        %1720 = vmatprep.subr.mxu0 0.0
        %1721 = vmatpush1.msra.mxu0 0.0
        %1722 = vmatprep.subr.mxu0 0.0
        %1723 = vmatpush1.msra.mxu0 0.0
        %1724 = vmatprep.subr.mxu0 0.0
        %1725 = vmatpush1.msra.mxu0 0.0
        %1726 = vmatprep.subr.mxu0 0.0
        %1727 = vmatpush1.msra.mxu0 0.0
        %1728 = vmatprep.subr.mxu0 0.0
        %1729 = vmatpush1.msra.mxu0 0.0
        %1730 = vmatprep.subr.mxu0 0.0
        %1731 = vmatpush1.msra.mxu0 0.0
        %1732 = vmatprep.subr.mxu0 0.0
        %1733 = vmatpush1.msra.mxu0 0.0
        %1734 = vmatprep.subr.mxu0 0.0
        %1735 = vmatpush1.msra.mxu0 0.0
        %1736 = vmatprep.subr.mxu0 0.0
        %1737 = vmatpush1.msra.mxu0 0.0
        %1738 = vmatprep.subr.mxu0 0.0
        %1739 = vmatpush1.msra.mxu0 0.0
        %1740 = vmatprep.subr.mxu0 0.0
        %1741 = vmatpush1.msra.mxu0 0.0
        %1742 = vmatprep.subr.mxu0 0.0
        %1743 = vmatpush1.msra.mxu0 0.0
        %1744 = vmatprep.subr.mxu0 0.0
        %1745 = vmatpush1.msra.mxu0 0.0
        %1746 = vmatprep.subr.mxu0 0.0
        %1747 = vmatpush1.msra.mxu0 0.0
        %1748 = vmatprep.subr.mxu0 0.0
        %1749 = vmatpush1.msra.mxu0 0.0
        %1750 = vmatprep.subr.mxu0 0.0
        %1751 = vmatpush1.msra.mxu0 0.0
        %1752 = vmatprep.subr.mxu0 0.0
        %1753 = vmatpush1.msra.mxu0 0.0
        %1754 = vmatprep.subr.mxu0 0.0
        %1755 = vmatpush1.msra.mxu0 0.0
        %1756 = vmatprep.subr.mxu0 0.0
        %1757 = vmatpush1.msra.mxu0 0.0
        %1758 = vmatprep.subr.mxu0 0.0
        %1759 = vmatpush1.msra.mxu0 0.0
        %1760 = vmatprep.subr.mxu0 0.0
        %1761 = vmatpush1.msra.mxu0 0.0
        %1762 = vmatprep.subr.mxu0 0.0
        %1763 = vmatpush1.msra.mxu0 0.0
        %1764 = vmatprep.subr.mxu0 0.0
        %1765 = vmatpush1.msra.mxu0 0.0
        %1766 = vmatprep.subr.mxu0 0.0
        %1767 = vmatpush1.msra.mxu0 0.0
        %1768 = vmatprep.subr.mxu0 0.0
        %1769 = vmatpush1.msra.mxu0 0.0
        %1770 = vmatprep.subr.mxu0 0.0
        %1771 = vmatpush1.msra.mxu0 0.0
        %1772 = vmatprep.subr.mxu0 0.0
        %1773 = vmatpush1.msra.mxu0 0.0
        %1774 = vmatprep.subr.mxu0 0.0
        %1775 = vmatpush1.msra.mxu0 0.0
        %1776 = vmatprep.subr.mxu0 0.0
        %1777 = vmatpush1.msra.mxu0 0.0
        %1778 = vmatprep.mubr.f32.mxu0 0.0
        %v1779 = vand.u32 %v210, 4294901760
        %1780 = vmatmul.mubr.f32.gmra.mrb[0].mxu0 %v1779
        %v1781 = vpop.f32.mrb[0].mxu0
        %v1782 = vadd.f32 %v1425, %v1781
        %v1783 = vpop.f32.mrb[0].mxu0
        %v1784 = vadd.f32 %v1427, %v1783
        %1785 = vmatprep.mubr.f32.mxu0 0.0
        %v1786 = vand.u32 %v213, 4294901760
        %1787 = vmatmul.mubr.f32.gmra.mrb[0].mxu0 %v1786
        %v1788 = vpop.f32.mrb[0].mxu0
        %v1789 = vadd.f32 %v1434, %v1788
        %v1790 = vpop.f32.mrb[0].mxu0
        %v1791 = vadd.f32 %v1436, %v1790
        %1792 = vmatprep.mubr.f32.mxu0 0.0
        %v1793 = vand.u32 %v216, 4294901760
        %1794 = vmatmul.mubr.f32.gmra.mrb[0].mxu0 %v1793
        %v1795 = vpop.f32.mrb[0].mxu0
        %v1796 = vadd.f32 %v1443, %v1795
        %v1797 = vpop.f32.mrb[0].mxu0
        %v1798 = vadd.f32 %v1445, %v1797
        %1799 = vmatprep.mubr.f32.mxu0 0.0
        %v1800 = vand.u32 %v219, 4294901760
        %1801 = vmatmul.mubr.f32.gmra.mrb[0].mxu0 %v1800
        %v1802 = vpop.f32.mrb[0].mxu0
        %v1803 = vadd.f32 %v1452, %v1802
        %v1804 = vpop.f32.mrb[0].mxu0
        %v1805 = vadd.f32 %v1454, %v1804
        %1806 = vmatprep.mubr.f32.mxu0 0.0
        %v1807 = vand.u32 %v222, 4294901760
        %1808 = vmatmul.mubr.f32.gmra.mrb[0].mxu0 %v1807
        %v1809 = vpop.f32.mrb[0].mxu0
        %v1810 = vadd.f32 %v1461, %v1809
        %v1811 = vpop.f32.mrb[0].mxu0
        %v1812 = vadd.f32 %v1463, %v1811
        %1813 = vmatprep.mubr.f32.mxu0 0.0
        %v1814 = vand.u32 %v225, 4294901760
        %1815 = vmatmul.mubr.f32.gmra.mrb[0].mxu0 %v1814
        %v1816 = vpop.f32.mrb[0].mxu0
        %v1817 = vadd.f32 %v1470, %v1816
        %v1818 = vpop.f32.mrb[0].mxu0
        %v1819 = vadd.f32 %v1472, %v1818
        %1820 = vmatprep.mubr.f32.mxu0 0.0
        %v1821 = vand.u32 %v228, 4294901760
        %1822 = vmatmul.mubr.f32.gmra.mrb[0].mxu0 %v1821
        %v1823 = vpop.f32.mrb[0].mxu0
        %v1824 = vadd.f32 %v1479, %v1823
        %v1825 = vpop.f32.mrb[0].mxu0
        %v1826 = vadd.f32 %v1481, %v1825
        %1827 = vmatprep.mubr.f32.mxu0 0.0
        %v1828 = vand.u32 %v231, 4294901760
        %1829 = vmatmul.mubr.f32.gmra.mrb[0].mxu0 %v1828
        %v1830 = vpop.f32.mrb[0].mxu0
        %v1831 = vadd.f32 %v1488, %v1830
        %v1832 = vpop.f32.mrb[0].mxu0
        %v1833 = vadd.f32 %v1490, %v1832
        %1834 = vmatprep.mubr.f32.mxu0 0.0
        %v1835 = vand.u32 %v234, 4294901760
        %1836 = vmatmul.mubr.f32.gmra.mrb[0].mxu0 %v1835
        %v1837 = vpop.f32.mrb[0].mxu0
        %v1838 = vadd.f32 %v1497, %v1837
        %v1839 = vpop.f32.mrb[0].mxu0
        %v1840 = vadd.f32 %v1499, %v1839
        %1841 = vmatprep.mubr.f32.mxu0 0.0
        %v1842 = vand.u32 %v237, 4294901760
        %1843 = vmatmul.mubr.f32.gmra.mrb[0].mxu0 %v1842
        %v1844 = vpop.f32.mrb[0].mxu0
        %v1845 = vadd.f32 %v1506, %v1844
        %v1846 = vpop.f32.mrb[0].mxu0
        %v1847 = vadd.f32 %v1508, %v1846
        %1848 = vmatprep.mubr.f32.mxu0 0.0
        %v1849 = vand.u32 %v240, 4294901760
        %1850 = vmatmul.mubr.f32.gmra.mrb[0].mxu0 %v1849
        %v1851 = vpop.f32.mrb[0].mxu0
        %v1852 = vadd.f32 %v1515, %v1851
        %v1853 = vpop.f32.mrb[0].mxu0
        %v1854 = vadd.f32 %v1517, %v1853
        %1855 = vmatprep.mubr.f32.mxu0 0.0
        %v1856 = vand.u32 %v243, 4294901760
        %1857 = vmatmul.mubr.f32.gmra.mrb[0].mxu0 %v1856
        %v1858 = vpop.f32.mrb[0].mxu0
        %v1859 = vadd.f32 %v1524, %v1858
        %v1860 = vpop.f32.mrb[0].mxu0
        %v1861 = vadd.f32 %v1526, %v1860
        %1862 = vmatprep.mubr.f32.mxu0 0.0
        %v1863 = vand.u32 %v246, 4294901760
        %1864 = vmatmul.mubr.f32.gmra.mrb[0].mxu0 %v1863
        %v1865 = vpop.f32.mrb[0].mxu0
        %v1866 = vadd.f32 %v1533, %v1865
        %v1867 = vpop.f32.mrb[0].mxu0
        %v1868 = vadd.f32 %v1535, %v1867
        %1869 = vmatprep.mubr.f32.mxu0 0.0
        %v1870 = vand.u32 %v249, 4294901760
        %1871 = vmatmul.mubr.f32.gmra.mrb[0].mxu0 %v1870
        %v1872 = vpop.f32.mrb[0].mxu0
        %v1873 = vadd.f32 %v1542, %v1872
        %v1874 = vpop.f32.mrb[0].mxu0
        %v1875 = vadd.f32 %v1544, %v1874
        %1876 = vmatprep.mubr.f32.mxu0 0.0
        %v1877 = vand.u32 %v252, 4294901760
        %1878 = vmatmul.mubr.f32.gmra.mrb[0].mxu0 %v1877
        %v1879 = vpop.f32.mrb[0].mxu0
        %v1880 = vadd.f32 %v1551, %v1879
        %v1881 = vpop.f32.mrb[0].mxu0
        %v1882 = vadd.f32 %v1553, %v1881
        %1883 = vmatprep.mubr.f32.mxu0 0.0
        %v1884 = vand.u32 %v255, 4294901760
        %1885 = vmatmul.mubr.f32.gmra.mrb[0].mxu0 %v1884
        %v1886 = vpop.f32.mrb[0].mxu0
        %v1887 = vadd.f32 %v1560, %v1886
        %v1888 = vpop.f32.mrb[0].mxu0
        %v1889 = vadd.f32 %v1562, %v1888
        %1890 = vmatprep.mubr.f32.mxu0 0.0
        %v1891 = vand.u32 %v258, 4294901760
        %1892 = vmatmul.mubr.f32.gmra.mrb[0].mxu0 %v1891
        %v1893 = vpop.f32.mrb[0].mxu0
        %v1894 = vadd.f32 %v1569, %v1893
        %v1895 = vpop.f32.mrb[0].mxu0
        %v1896 = vadd.f32 %v1571, %v1895
        %1897 = vmatprep.mubr.f32.mxu0 0.0
        %v1898 = vand.u32 %v261, 4294901760
        %1899 = vmatmul.mubr.f32.gmra.mrb[0].mxu0 %v1898
        %v1900 = vpop.f32.mrb[0].mxu0
        %v1901 = vadd.f32 %v1578, %v1900
        %v1902 = vpop.f32.mrb[0].mxu0
        %v1903 = vadd.f32 %v1580, %v1902
        %1904 = vmatprep.mubr.f32.mxu0 0.0
        %v1905 = vand.u32 %v264, 4294901760
        %1906 = vmatmul.mubr.f32.gmra.mrb[0].mxu0 %v1905
        %v1907 = vpop.f32.mrb[0].mxu0
        %v1908 = vadd.f32 %v1587, %v1907
        %v1909 = vpop.f32.mrb[0].mxu0
        %v1910 = vadd.f32 %v1589, %v1909
        %1911 = vmatprep.mubr.f32.mxu0 0.0
        %v1912 = vand.u32 %v267, 4294901760
        %1913 = vmatmul.mubr.f32.gmra.mrb[0].mxu0 %v1912
        %v1914 = vpop.f32.mrb[0].mxu0
        %v1915 = vadd.f32 %v1596, %v1914
        %v1916 = vpop.f32.mrb[0].mxu0
        %v1917 = vadd.f32 %v1598, %v1916
        %1918 = vmatprep.mubr.f32.mxu0 0.0
        %v1919 = vand.u32 %v270, 4294901760
        %1920 = vmatmul.mubr.f32.gmra.mrb[0].mxu0 %v1919
        %v1921 = vpop.f32.mrb[0].mxu0
        %v1922 = vadd.f32 %v1605, %v1921
        %v1923 = vpop.f32.mrb[0].mxu0
        %v1924 = vadd.f32 %v1607, %v1923
        %1925 = vmatprep.mubr.f32.mxu0 0.0
        %v1926 = vand.u32 %v273, 4294901760
        %1927 = vmatmul.mubr.f32.gmra.mrb[0].mxu0 %v1926
        %v1928 = vpop.f32.mrb[0].mxu0
        %v1929 = vadd.f32 %v1614, %v1928
        %v1930 = vpop.f32.mrb[0].mxu0
        %v1931 = vadd.f32 %v1616, %v1930
        %1932 = vmatprep.mubr.f32.mxu0 0.0
        %v1933 = vand.u32 %v276, 4294901760
        %1934 = vmatmul.mubr.f32.gmra.mrb[0].mxu0 %v1933
        %v1935 = vpop.f32.mrb[0].mxu0
        %v1936 = vadd.f32 %v1623, %v1935
        %v1937 = vpop.f32.mrb[0].mxu0
        %v1938 = vadd.f32 %v1625, %v1937
        %1939 = vmatprep.mubr.f32.mxu0 0.0
        %v1940 = vand.u32 %v279, 4294901760
        %1941 = vmatmul.mubr.f32.gmra.mrb[0].mxu0 %v1940
        %v1942 = vpop.f32.mrb[0].mxu0
        %v1943 = vadd.f32 %v1632, %v1942
        %v1944 = vpop.f32.mrb[0].mxu0
        %v1945 = vadd.f32 %v1634, %v1944
        %1946 = vmatprep.mubr.f32.mxu0 0.0
        %v1947 = vand.u32 %v282, 4294901760
        %1948 = vmatmul.mubr.f32.gmra.mrb[0].mxu0 %v1947
        %v1949 = vpop.f32.mrb[0].mxu0
        %v1950 = vadd.f32 %v1641, %v1949
        %v1951 = vpop.f32.mrb[0].mxu0
        %v1952 = vadd.f32 %v1643, %v1951
        %1953 = vmatprep.mubr.f32.mxu0 0.0
        %v1954 = vand.u32 %v285, 4294901760
        %1955 = vmatmul.mubr.f32.gmra.mrb[0].mxu0 %v1954
        %v1956 = vpop.f32.mrb[0].mxu0
        %v1957 = vadd.f32 %v1650, %v1956
        %v1958 = vpop.f32.mrb[0].mxu0
        %v1959 = vadd.f32 %v1652, %v1958
        %1960 = vmatprep.mubr.f32.mxu0 0.0
        %v1961 = vand.u32 %v288, 4294901760
        %1962 = vmatmul.mubr.f32.gmra.mrb[0].mxu0 %v1961
        %v1963 = vpop.f32.mrb[0].mxu0
        %v1964 = vadd.f32 %v1659, %v1963
        %v1965 = vpop.f32.mrb[0].mxu0
        %v1966 = vadd.f32 %v1661, %v1965
        %1967 = vmatprep.mubr.f32.mxu0 0.0
        %v1968 = vand.u32 %v291, 4294901760
        %1969 = vmatmul.mubr.f32.gmra.mrb[0].mxu0 %v1968
        %v1970 = vpop.f32.mrb[0].mxu0
        %v1971 = vadd.f32 %v1668, %v1970
        %v1972 = vpop.f32.mrb[0].mxu0
        %v1973 = vadd.f32 %v1670, %v1972
        %1974 = vmatprep.mubr.f32.mxu0 0.0
        %v1975 = vand.u32 %v294, 4294901760
        %1976 = vmatmul.mubr.f32.gmra.mrb[0].mxu0 %v1975
        %v1977 = vpop.f32.mrb[0].mxu0
        %v1978 = vadd.f32 %v1677, %v1977
        %v1979 = vpop.f32.mrb[0].mxu0
        %v1980 = vadd.f32 %v1679, %v1979
        %1981 = vmatprep.mubr.f32.mxu0 0.0
        %v1982 = vand.u32 %v297, 4294901760
        %1983 = vmatmul.mubr.f32.gmra.mrb[0].mxu0 %v1982
        %v1984 = vpop.f32.mrb[0].mxu0
        %v1985 = vadd.f32 %v1686, %v1984
        %v1986 = vpop.f32.mrb[0].mxu0
        %v1987 = vadd.f32 %v1688, %v1986
        %1988 = vmatprep.mubr.f32.mxu0 0.0
        %v1989 = vand.u32 %v300, 4294901760
        %1990 = vmatmul.mubr.f32.gmra.mrb[0].mxu0 %v1989
        %v1991 = vpop.f32.mrb[0].mxu0
        %v1992 = vadd.f32 %v1695, %v1991
        %v1993 = vpop.f32.mrb[0].mxu0
        %v1994 = vadd.f32 %v1697, %v1993
        %1995 = vmatprep.mubr.f32.mxu0 0.0
        %v1996 = vand.u32 %v303, 4294901760
        %1997 = vmatmul.mubr.f32.gmra.mrb[0].mxu0 %v1996
        %v1998 = vpop.f32.mrb[0].mxu0
        %v1999 = vadd.f32 %v1704, %v1998
        %v2000 = vpop.f32.mrb[0].mxu0
        %v2001 = vadd.f32 %v1706, %v2000
        %2002 = vdwg.mxu0
        %v2003 = vand.u32 %v308, 4294901760
        %2004 = vmatprep.subr.mxu0 %v2003
        %v2005 = vand.u32 %v306, 4294901760
        %2006 = vmatpush1.msra.mxu0 %v2005
        %2007 = vmatprep.subr.mxu0 0.0
        %2008 = vmatpush1.msra.mxu0 0.0
        %2009 = vmatprep.subr.mxu0 0.0
        %2010 = vmatpush1.msra.mxu0 0.0
        %2011 = vmatprep.subr.mxu0 0.0
        %2012 = vmatpush1.msra.mxu0 0.0
        %2013 = vmatprep.subr.mxu0 0.0
        %2014 = vmatpush1.msra.mxu0 0.0
        %2015 = vmatprep.subr.mxu0 0.0
        %2016 = vmatpush1.msra.mxu0 0.0
        %2017 = vmatprep.subr.mxu0 0.0
        %2018 = vmatpush1.msra.mxu0 0.0
        %2019 = vmatprep.subr.mxu0 0.0
        %2020 = vmatpush1.msra.mxu0 0.0
        %2021 = vmatprep.subr.mxu0 0.0
        %2022 = vmatpush1.msra.mxu0 0.0
        %2023 = vmatprep.subr.mxu0 0.0
        %2024 = vmatpush1.msra.mxu0 0.0
        %2025 = vmatprep.subr.mxu0 0.0
        %2026 = vmatpush1.msra.mxu0 0.0
        %2027 = vmatprep.subr.mxu0 0.0
        %2028 = vmatpush1.msra.mxu0 0.0
        %2029 = vmatprep.subr.mxu0 0.0
        %2030 = vmatpush1.msra.mxu0 0.0
        %2031 = vmatprep.subr.mxu0 0.0
        %2032 = vmatpush1.msra.mxu0 0.0
        %2033 = vmatprep.subr.mxu0 0.0
        %2034 = vmatpush1.msra.mxu0 0.0
        %2035 = vmatprep.subr.mxu0 0.0
        %2036 = vmatpush1.msra.mxu0 0.0
        %2037 = vmatprep.subr.mxu0 0.0
        %2038 = vmatpush1.msra.mxu0 0.0
        %2039 = vmatprep.subr.mxu0 0.0
        %2040 = vmatpush1.msra.mxu0 0.0
        %2041 = vmatprep.subr.mxu0 0.0
        %2042 = vmatpush1.msra.mxu0 0.0
        %2043 = vmatprep.subr.mxu0 0.0
        %2044 = vmatpush1.msra.mxu0 0.0
        %2045 = vmatprep.subr.mxu0 0.0
        %2046 = vmatpush1.msra.mxu0 0.0
        %2047 = vmatprep.subr.mxu0 0.0
        %2048 = vmatpush1.msra.mxu0 0.0
        %2049 = vmatprep.subr.mxu0 0.0
        %2050 = vmatpush1.msra.mxu0 0.0
        %2051 = vmatprep.subr.mxu0 0.0
        %2052 = vmatpush1.msra.mxu0 0.0
        %2053 = vmatprep.subr.mxu0 0.0
        %2054 = vmatpush1.msra.mxu0 0.0
        %2055 = vmatprep.subr.mxu0 0.0
        %2056 = vmatpush1.msra.mxu0 0.0
        %2057 = vmatprep.subr.mxu0 0.0
        %2058 = vmatpush1.msra.mxu0 0.0
        %2059 = vmatprep.subr.mxu0 0.0
        %2060 = vmatpush1.msra.mxu0 0.0
        %2061 = vmatprep.subr.mxu0 0.0
        %2062 = vmatpush1.msra.mxu0 0.0
        %2063 = vmatprep.subr.mxu0 0.0
        %2064 = vmatpush1.msra.mxu0 0.0
        %2065 = vmatprep.subr.mxu0 0.0
        %2066 = vmatpush1.msra.mxu0 0.0
        %2067 = vmatprep.subr.mxu0 0.0
        %2068 = vmatpush1.msra.mxu0 0.0
        %2069 = vmatprep.mubr.f32.mxu0 0.0
        %v2070 = vand.u32 %v210, 4294901760
        %2071 = vmatmul.mubr.f32.gmra.mrb[0].mxu0 %v2070
        %v2072 = vpop.f32.mrb[0].mxu0
        %v2073 = vadd.f32 %v1782, %v2072
        %v2074 = vpop.f32.mrb[0].mxu0
        %v2075 = vadd.f32 %v1784, %v2074
        %2076 = vmatprep.mubr.f32.mxu0 0.0
        %v2077 = vand.u32 %v213, 4294901760
        %2078 = vmatmul.mubr.f32.gmra.mrb[0].mxu0 %v2077
        %v2079 = vpop.f32.mrb[0].mxu0
        %v2080 = vadd.f32 %v1789, %v2079
        %v2081 = vpop.f32.mrb[0].mxu0
        %v2082 = vadd.f32 %v1791, %v2081
        %2083 = vmatprep.mubr.f32.mxu0 0.0
        %v2084 = vand.u32 %v216, 4294901760
        %2085 = vmatmul.mubr.f32.gmra.mrb[0].mxu0 %v2084
        %v2086 = vpop.f32.mrb[0].mxu0
        %v2087 = vadd.f32 %v1796, %v2086
        %v2088 = vpop.f32.mrb[0].mxu0
        %v2089 = vadd.f32 %v1798, %v2088
        %2090 = vmatprep.mubr.f32.mxu0 0.0
        %v2091 = vand.u32 %v219, 4294901760
        %2092 = vmatmul.mubr.f32.gmra.mrb[0].mxu0 %v2091
        %v2093 = vpop.f32.mrb[0].mxu0
        %v2094 = vadd.f32 %v1803, %v2093
        %v2095 = vpop.f32.mrb[0].mxu0
        %v2096 = vadd.f32 %v1805, %v2095
        %2097 = vmatprep.mubr.f32.mxu0 0.0
        %v2098 = vand.u32 %v222, 4294901760
        %2099 = vmatmul.mubr.f32.gmra.mrb[0].mxu0 %v2098
        %v2100 = vpop.f32.mrb[0].mxu0
        %v2101 = vadd.f32 %v1810, %v2100
        %v2102 = vpop.f32.mrb[0].mxu0
        %v2103 = vadd.f32 %v1812, %v2102
        %2104 = vmatprep.mubr.f32.mxu0 0.0
        %v2105 = vand.u32 %v225, 4294901760
        %2106 = vmatmul.mubr.f32.gmra.mrb[0].mxu0 %v2105
        %v2107 = vpop.f32.mrb[0].mxu0
        %v2108 = vadd.f32 %v1817, %v2107
        %v2109 = vpop.f32.mrb[0].mxu0
        %v2110 = vadd.f32 %v1819, %v2109
        %2111 = vmatprep.mubr.f32.mxu0 0.0
        %v2112 = vand.u32 %v228, 4294901760
        %2113 = vmatmul.mubr.f32.gmra.mrb[0].mxu0 %v2112
        %v2114 = vpop.f32.mrb[0].mxu0
        %v2115 = vadd.f32 %v1824, %v2114
        %v2116 = vpop.f32.mrb[0].mxu0
        %v2117 = vadd.f32 %v1826, %v2116
        %2118 = vmatprep.mubr.f32.mxu0 0.0
        %v2119 = vand.u32 %v231, 4294901760
        %2120 = vmatmul.mubr.f32.gmra.mrb[0].mxu0 %v2119
        %v2121 = vpop.f32.mrb[0].mxu0
        %v2122 = vadd.f32 %v1831, %v2121
        %v2123 = vpop.f32.mrb[0].mxu0
        %v2124 = vadd.f32 %v1833, %v2123
        %2125 = vmatprep.mubr.f32.mxu0 0.0
        %v2126 = vand.u32 %v234, 4294901760
        %2127 = vmatmul.mubr.f32.gmra.mrb[0].mxu0 %v2126
        %v2128 = vpop.f32.mrb[0].mxu0
        %v2129 = vadd.f32 %v1838, %v2128
        %v2130 = vpop.f32.mrb[0].mxu0
        %v2131 = vadd.f32 %v1840, %v2130
        %2132 = vmatprep.mubr.f32.mxu0 0.0
        %v2133 = vand.u32 %v237, 4294901760
        %2134 = vmatmul.mubr.f32.gmra.mrb[0].mxu0 %v2133
        %v2135 = vpop.f32.mrb[0].mxu0
        %v2136 = vadd.f32 %v1845, %v2135
        %v2137 = vpop.f32.mrb[0].mxu0
        %v2138 = vadd.f32 %v1847, %v2137
        %2139 = vmatprep.mubr.f32.mxu0 0.0
        %v2140 = vand.u32 %v240, 4294901760
        %2141 = vmatmul.mubr.f32.gmra.mrb[0].mxu0 %v2140
        %v2142 = vpop.f32.mrb[0].mxu0
        %v2143 = vadd.f32 %v1852, %v2142
        %v2144 = vpop.f32.mrb[0].mxu0
        %v2145 = vadd.f32 %v1854, %v2144
        %2146 = vmatprep.mubr.f32.mxu0 0.0
        %v2147 = vand.u32 %v243, 4294901760
        %2148 = vmatmul.mubr.f32.gmra.mrb[0].mxu0 %v2147
        %v2149 = vpop.f32.mrb[0].mxu0
        %v2150 = vadd.f32 %v1859, %v2149
        %v2151 = vpop.f32.mrb[0].mxu0
        %v2152 = vadd.f32 %v1861, %v2151
        %2153 = vmatprep.mubr.f32.mxu0 0.0
        %v2154 = vand.u32 %v246, 4294901760
        %2155 = vmatmul.mubr.f32.gmra.mrb[0].mxu0 %v2154
        %v2156 = vpop.f32.mrb[0].mxu0
        %v2157 = vadd.f32 %v1866, %v2156
        %v2158 = vpop.f32.mrb[0].mxu0
        %v2159 = vadd.f32 %v1868, %v2158
        %2160 = vmatprep.mubr.f32.mxu0 0.0
        %v2161 = vand.u32 %v249, 4294901760
        %2162 = vmatmul.mubr.f32.gmra.mrb[0].mxu0 %v2161
        %v2163 = vpop.f32.mrb[0].mxu0
        %v2164 = vadd.f32 %v1873, %v2163
        %v2165 = vpop.f32.mrb[0].mxu0
        %v2166 = vadd.f32 %v1875, %v2165
        %2167 = vmatprep.mubr.f32.mxu0 0.0
        %v2168 = vand.u32 %v252, 4294901760
        %2169 = vmatmul.mubr.f32.gmra.mrb[0].mxu0 %v2168
        %v2170 = vpop.f32.mrb[0].mxu0
        %v2171 = vadd.f32 %v1880, %v2170
        %v2172 = vpop.f32.mrb[0].mxu0
        %v2173 = vadd.f32 %v1882, %v2172
        %2174 = vmatprep.mubr.f32.mxu0 0.0
        %v2175 = vand.u32 %v255, 4294901760
        %2176 = vmatmul.mubr.f32.gmra.mrb[0].mxu0 %v2175
        %v2177 = vpop.f32.mrb[0].mxu0
        %v2178 = vadd.f32 %v1887, %v2177
        %v2179 = vpop.f32.mrb[0].mxu0
        %v2180 = vadd.f32 %v1889, %v2179
        %2181 = vmatprep.mubr.f32.mxu0 0.0
        %v2182 = vand.u32 %v258, 4294901760
        %2183 = vmatmul.mubr.f32.gmra.mrb[0].mxu0 %v2182
        %v2184 = vpop.f32.mrb[0].mxu0
        %v2185 = vadd.f32 %v1894, %v2184
        %v2186 = vpop.f32.mrb[0].mxu0
        %v2187 = vadd.f32 %v1896, %v2186
        %2188 = vmatprep.mubr.f32.mxu0 0.0
        %v2189 = vand.u32 %v261, 4294901760
        %2190 = vmatmul.mubr.f32.gmra.mrb[0].mxu0 %v2189
        %v2191 = vpop.f32.mrb[0].mxu0
        %v2192 = vadd.f32 %v1901, %v2191
        %v2193 = vpop.f32.mrb[0].mxu0
        %v2194 = vadd.f32 %v1903, %v2193
        %2195 = vmatprep.mubr.f32.mxu0 0.0
        %v2196 = vand.u32 %v264, 4294901760
        %2197 = vmatmul.mubr.f32.gmra.mrb[0].mxu0 %v2196
        %v2198 = vpop.f32.mrb[0].mxu0
        %v2199 = vadd.f32 %v1908, %v2198
        %v2200 = vpop.f32.mrb[0].mxu0
        %v2201 = vadd.f32 %v1910, %v2200
        %2202 = vmatprep.mubr.f32.mxu0 0.0
        %v2203 = vand.u32 %v267, 4294901760
        %2204 = vmatmul.mubr.f32.gmra.mrb[0].mxu0 %v2203
        %v2205 = vpop.f32.mrb[0].mxu0
        %v2206 = vadd.f32 %v1915, %v2205
        %v2207 = vpop.f32.mrb[0].mxu0
        %v2208 = vadd.f32 %v1917, %v2207
        %2209 = vmatprep.mubr.f32.mxu0 0.0
        %v2210 = vand.u32 %v270, 4294901760
        %2211 = vmatmul.mubr.f32.gmra.mrb[0].mxu0 %v2210
        %v2212 = vpop.f32.mrb[0].mxu0
        %v2213 = vadd.f32 %v1922, %v2212
        %v2214 = vpop.f32.mrb[0].mxu0
        %v2215 = vadd.f32 %v1924, %v2214
        %2216 = vmatprep.mubr.f32.mxu0 0.0
        %v2217 = vand.u32 %v273, 4294901760
        %2218 = vmatmul.mubr.f32.gmra.mrb[0].mxu0 %v2217
        %v2219 = vpop.f32.mrb[0].mxu0
        %v2220 = vadd.f32 %v1929, %v2219
        %v2221 = vpop.f32.mrb[0].mxu0
        %v2222 = vadd.f32 %v1931, %v2221
        %2223 = vmatprep.mubr.f32.mxu0 0.0
        %v2224 = vand.u32 %v276, 4294901760
        %2225 = vmatmul.mubr.f32.gmra.mrb[0].mxu0 %v2224
        %v2226 = vpop.f32.mrb[0].mxu0
        %v2227 = vadd.f32 %v1936, %v2226
        %v2228 = vpop.f32.mrb[0].mxu0
        %v2229 = vadd.f32 %v1938, %v2228
        %2230 = vmatprep.mubr.f32.mxu0 0.0
        %v2231 = vand.u32 %v279, 4294901760
        %2232 = vmatmul.mubr.f32.gmra.mrb[0].mxu0 %v2231
        %v2233 = vpop.f32.mrb[0].mxu0
        %v2234 = vadd.f32 %v1943, %v2233
        %v2235 = vpop.f32.mrb[0].mxu0
        %v2236 = vadd.f32 %v1945, %v2235
        %2237 = vmatprep.mubr.f32.mxu0 0.0
        %v2238 = vand.u32 %v282, 4294901760
        %2239 = vmatmul.mubr.f32.gmra.mrb[0].mxu0 %v2238
        %v2240 = vpop.f32.mrb[0].mxu0
        %v2241 = vadd.f32 %v1950, %v2240
        %v2242 = vpop.f32.mrb[0].mxu0
        %v2243 = vadd.f32 %v1952, %v2242
        %2244 = vmatprep.mubr.f32.mxu0 0.0
        %v2245 = vand.u32 %v285, 4294901760
        %2246 = vmatmul.mubr.f32.gmra.mrb[0].mxu0 %v2245
        %v2247 = vpop.f32.mrb[0].mxu0
        %v2248 = vadd.f32 %v1957, %v2247
        %v2249 = vpop.f32.mrb[0].mxu0
        %v2250 = vadd.f32 %v1959, %v2249
        %2251 = vmatprep.mubr.f32.mxu0 0.0
        %v2252 = vand.u32 %v288, 4294901760
        %2253 = vmatmul.mubr.f32.gmra.mrb[0].mxu0 %v2252
        %v2254 = vpop.f32.mrb[0].mxu0
        %v2255 = vadd.f32 %v1964, %v2254
        %v2256 = vpop.f32.mrb[0].mxu0
        %v2257 = vadd.f32 %v1966, %v2256
        %2258 = vmatprep.mubr.f32.mxu0 0.0
        %v2259 = vand.u32 %v291, 4294901760
        %2260 = vmatmul.mubr.f32.gmra.mrb[0].mxu0 %v2259
        %v2261 = vpop.f32.mrb[0].mxu0
        %v2262 = vadd.f32 %v1971, %v2261
        %v2263 = vpop.f32.mrb[0].mxu0
        %v2264 = vadd.f32 %v1973, %v2263
        %2265 = vmatprep.mubr.f32.mxu0 0.0
        %v2266 = vand.u32 %v294, 4294901760
        %2267 = vmatmul.mubr.f32.gmra.mrb[0].mxu0 %v2266
        %v2268 = vpop.f32.mrb[0].mxu0
        %v2269 = vadd.f32 %v1978, %v2268
        %v2270 = vpop.f32.mrb[0].mxu0
        %v2271 = vadd.f32 %v1980, %v2270
        %2272 = vmatprep.mubr.f32.mxu0 0.0
        %v2273 = vand.u32 %v297, 4294901760
        %2274 = vmatmul.mubr.f32.gmra.mrb[0].mxu0 %v2273
        %v2275 = vpop.f32.mrb[0].mxu0
        %v2276 = vadd.f32 %v1985, %v2275
        %v2277 = vpop.f32.mrb[0].mxu0
        %v2278 = vadd.f32 %v1987, %v2277
        %2279 = vmatprep.mubr.f32.mxu0 0.0
        %v2280 = vand.u32 %v300, 4294901760
        %2281 = vmatmul.mubr.f32.gmra.mrb[0].mxu0 %v2280
        %v2282 = vpop.f32.mrb[0].mxu0
        %v2283 = vadd.f32 %v1992, %v2282
        %v2284 = vpop.f32.mrb[0].mxu0
        %v2285 = vadd.f32 %v1994, %v2284
        %2286 = vmatprep.mubr.f32.mxu0 0.0
        %v2287 = vand.u32 %v303, 4294901760
        %2288 = vmatmul.mubr.f32.gmra.mrb[0].mxu0 %v2287
        %v2289 = vpop.f32.mrb[0].mxu0
        %v2290 = vadd.f32 %v1999, %v2289
        %v2291 = vpop.f32.mrb[0].mxu0
        %v2292 = vadd.f32 %v2001, %v2291
        %2293 = vdwg.mxu0
        %2294 = vst [vmem:[%s161] sm:$0xff] %v2073
        %2295 = vst [vmem:[%s161 + $0x8] sm:$0xff] %v2075
        %2296 = vst [vmem:[%s161 + $0x10] sm:$0xff] %v2080
        %2297 = vst [vmem:[%s161 + $0x18] sm:$0xff] %v2082
        %2298 = vst [vmem:[%s161 + $0x20] sm:$0xff] %v2087
        %2299 = vst [vmem:[%s161 + $0x28] sm:$0xff] %v2089
        %2300 = vst [vmem:[%s161 + $0x30] sm:$0xff] %v2094
        %2301 = vst [vmem:[%s161 + $0x38] sm:$0xff] %v2096
        %2302 = vst [vmem:[%s161 + $0x40] sm:$0xff] %v2101
        %2303 = vst [vmem:[%s161 + $0x48] sm:$0xff] %v2103
        %2304 = vst [vmem:[%s161 + $0x50] sm:$0xff] %v2108
        %2305 = vst [vmem:[%s161 + $0x58] sm:$0xff] %v2110
        %2306 = vst [vmem:[%s161 + $0x60] sm:$0xff] %v2115
        %2307 = vst [vmem:[%s161 + $0x68] sm:$0xff] %v2117
        %2308 = vst [vmem:[%s161 + $0x70] sm:$0xff] %v2122
        %2309 = vst [vmem:[%s161 + $0x78] sm:$0xff] %v2124
        %2310 = vst [vmem:[%s161 + $0x80] sm:$0xff] %v2129
        %2311 = vst [vmem:[%s161 + $0x88] sm:$0xff] %v2131
        %2312 = vst [vmem:[%s161 + $0x90] sm:$0xff] %v2136
        %2313 = vst [vmem:[%s161 + $0x98] sm:$0xff] %v2138
        %2314 = vst [vmem:[%s161 + $0xa0] sm:$0xff] %v2143
        %2315 = vst [vmem:[%s161 + $0xa8] sm:$0xff] %v2145
        %2316 = vst [vmem:[%s161 + $0xb0] sm:$0xff] %v2150
        %2317 = vst [vmem:[%s161 + $0xb8] sm:$0xff] %v2152
        %2318 = vst [vmem:[%s161 + $0xc0] sm:$0xff] %v2157
        %2319 = vst [vmem:[%s161 + $0xc8] sm:$0xff] %v2159
        %2320 = vst [vmem:[%s161 + $0xd0] sm:$0xff] %v2164
        %2321 = vst [vmem:[%s161 + $0xd8] sm:$0xff] %v2166
        %2322 = vst [vmem:[%s161 + $0xe0] sm:$0xff] %v2171
        %2323 = vst [vmem:[%s161 + $0xe8] sm:$0xff] %v2173
        %2324 = vst [vmem:[%s161 + $0xf0] sm:$0xff] %v2178
        %2325 = vst [vmem:[%s161 + $0xf8] sm:$0xff] %v2180
        %2326 = vst [vmem:[%s161 + $0x100] sm:$0xff] %v2185
        %2327 = vst [vmem:[%s161 + $0x108] sm:$0xff] %v2187
        %2328 = vst [vmem:[%s161 + $0x110] sm:$0xff] %v2192
        %2329 = vst [vmem:[%s161 + $0x118] sm:$0xff] %v2194
        %2330 = vst [vmem:[%s161 + $0x120] sm:$0xff] %v2199
        %2331 = vst [vmem:[%s161 + $0x128] sm:$0xff] %v2201
        %2332 = vst [vmem:[%s161 + $0x130] sm:$0xff] %v2206
        %2333 = vst [vmem:[%s161 + $0x138] sm:$0xff] %v2208
        %2334 = vst [vmem:[%s161 + $0x140] sm:$0xff] %v2213
        %2335 = vst [vmem:[%s161 + $0x148] sm:$0xff] %v2215
        %2336 = vst [vmem:[%s161 + $0x150] sm:$0xff] %v2220
        %2337 = vst [vmem:[%s161 + $0x158] sm:$0xff] %v2222
        %2338 = vst [vmem:[%s161 + $0x160] sm:$0xff] %v2227
        %2339 = vst [vmem:[%s161 + $0x168] sm:$0xff] %v2229
        %2340 = vst [vmem:[%s161 + $0x170] sm:$0xff] %v2234
        %2341 = vst [vmem:[%s161 + $0x178] sm:$0xff] %v2236
        %2342 = vst [vmem:[%s161 + $0x180] sm:$0xff] %v2241
        %2343 = vst [vmem:[%s161 + $0x188] sm:$0xff] %v2243
        %2344 = vst [vmem:[%s161 + $0x190] sm:$0xff] %v2248
        %2345 = vst [vmem:[%s161 + $0x198] sm:$0xff] %v2250
        %2346 = vst [vmem:[%s161 + $0x1a0] sm:$0xff] %v2255
        %2347 = vst [vmem:[%s161 + $0x1a8] sm:$0xff] %v2257
        %2348 = vst [vmem:[%s161 + $0x1b0] sm:$0xff] %v2262
        %2349 = vst [vmem:[%s161 + $0x1b8] sm:$0xff] %v2264
        %2350 = vst [vmem:[%s161 + $0x1c0] sm:$0xff] %v2269
        %2351 = vst [vmem:[%s161 + $0x1c8] sm:$0xff] %v2271
        %2352 = vst [vmem:[%s161 + $0x1d0] sm:$0xff] %v2276
        %2353 = vst [vmem:[%s161 + $0x1d8] sm:$0xff] %v2278
        %2354 = vst [vmem:[%s161 + $0x1e0] sm:$0xff] %v2283
        %2355 = vst [vmem:[%s161 + $0x1e8] sm:$0xff] %v2285
        %2356 = vst [vmem:[%s161 + $0x1f0] sm:$0xff] %v2290
        %2357 = vst [vmem:[%s161 + $0x1f8] sm:$0xff] %v2292
        %s2358 = sand.u32 %s87, 1
        %s2359 = scalar_lea.sflag [#allocation3], %s2358
        %s2360 = sand.u32 %s87, 1
        %s2361 = smul.addr %s2360, 512
        %s2362 = scalar_lea.vmem [#allocation2], %s2361
        // Predicated region
        $region29: #{tpu_custom_call.1} parent=27 // pred_check
          %p2363 = pneg %p97
        $region30: #{tpu_custom_call.1} parent=27 // pred_check_branch
          %2365 = sbr.rel (%p2363) target = $region32
        $region31: #{tpu_custom_call.1} parent=27 // pred_region
          %s2366 = smul.u32 2, %s21
          %s2368 = ssub.s32 8192, 8192
          %2369 = vsyncadd %s2359, %s2368
          %s2370 = smul.addr %s20, 64
          %s2371 = sadd.s32 %s2366, %s2370
          %s2372 = smul.addr %s2371, 128
          %s2373 = scalar_lea.hbm %s2, %s2372
          %s2374 = sshll.u32 %s2362, 4
          %s2375 = int_to_ptr.vmem [resolvable:$true] %s2374
          %2380 = dma.vmem_to_hbm [thread:$0]  %s2375, 8192, %s2373, %s2359, 256, 256, 16
        $region32: #{tpu_custom_call.1} parent=27 // pred_fallthru
          _
      $region28: #{tpu_custom_call.1} parent=5 // pred_fallthru
        _
      %p2381 = scmp.le.s32.totalorder 2, %s11
      // Predicated region
      $region33: #{tpu_custom_call.1} parent=5 // pred_check
        %p2382 = pneg %p2381
      $region34: #{tpu_custom_call.1} parent=5 // pred_check_branch
        %2384 = sbr.rel (%p2382) target = $region36
      $region35: #{tpu_custom_call.1} parent=5 // pred_region
        %s2385 = ssub.s32 %s11, 2
        // Predicated region
        $region37: #{tpu_custom_call.1} parent=35 // pred_check
          %p2386 = pneg %p103
        $region38: #{tpu_custom_call.1} parent=35 // pred_check_branch
          %2388 = sbr.rel (%p2386) target = $region40
        $region39: #{tpu_custom_call.1} parent=35 // pred_region
          %s2389 = sand.u32 %s88, 1
          %s2390 = scalar_lea.sflag [#allocation3], %s2389
          %s2391 = sand.u32 %s88, 1
          %s2392 = smul.addr %s2391, 512
          %s2393 = scalar_lea.vmem [#allocation2], %s2392
          %2394 = dma.done %s2390, 8192
        $region40: #{tpu_custom_call.1} parent=35 // pred_fallthru
          _
      $region36: #{tpu_custom_call.1} parent=5 // pred_fallthru
        _
    $region6: #{tpu_custom_call.1} parent=1 // loop_footer
      %s15 = sadd.s32 1, %s11
    $region7: #{tpu_custom_call.1} parent=1 // loop_footer_branch
      %10 = sbr.rel target = $region3
    $region8: #{tpu_custom_call.1} parent=1 // loop_exit
      _
    %2395 = vsyncpa [#allocation3], 1
    %s2396 = scalar_lea.sflag [#allocation3], 1
    %2397 = vsyncpa %s2396, 1

</llo_original>
